<compile_context>
chip_gen: v7x
topology: tpu7x:2x2x1
jax: 0.10.0
libtpu: 0.0.40
codegen_flags: <defaults>
</compile_context>

<pallas_src>
import math
from functools import partial

import jax
import jax.numpy as jnp
import numpy as np
from jax.experimental import pallas as pl
from jax.experimental.pallas import tpu as pltpu

NUM_HEADS = 8  # fixed by the PyTorch module (nn.MultiheadAttention(..., num_heads=8))
LN_EPS = 1e-5
NEG_INF = -1e30


def _multi_tensorcore_chip():
    """True on chips where a 'parallel' grid axis is split across multiple
    TensorCores (v7x, v4/v5p megacore). On single-TC chips (v5e/v6e) the whole
    batch is folded into one grid step to avoid per-step pipeline overhead."""
    try:
        kind = jax.devices()[0].device_kind.lower()
    except Exception:
        return False
    return any(tag in kind for tag in ("v7", "tpu7", "v4", "v5p"))


def _self_attention_kernel(
    x_ref,      # (1, nb, C*L)    lane-dense input slab for this grid step
    w1_ref,     # (3*nb*S, nb*C)  batch-block to_qkv (1x1 conv) weight
    wproj_ref,  # (4, E, E)       [Wq^T*scale, Wk^T, Wv^T, Wo^T]
    vecs_ref,   # (6, E)          [gamma, beta, bq*scale, bk, bv, b_op]
    masks_ref,  # (R, E + G)      [per-head lane mask | cross-batch -inf bias]
    wout_ref,   # (C, nb, G)      per-output-channel batch-block to_out weight
    pmat_ref,   # (C, L, C*L)     constant lane-block placement matrices
    bias_ref,   # (1, C*L)        to_out conv bias, lane-dense
    o_ref,      # (1, nb, C*L)
    *, num_heads, dim,
):
    f32 = jnp.float32
    nb = x_ref.shape[1]
    CL = x_ref.shape[2]
    C = dim
    L = CL // C
    E = L
    G = w1_ref.shape[0] // 3          # nb * S  (S = attention sequence length)

    x_slab = x_ref[...].reshape(nb, CL).astype(f32)              # (nb, C*L)

    vecs = vecs_ref[...].astype(f32)
    gamma, beta = vecs[0:1, :], vecs[1:2, :]
    bq, bk, bv, bo = vecs[2:3, :], vecs[3:4, :], vecs[4:5, :], vecs[5:6, :]

    masks = masks_ref[...].astype(f32)
    hmask = masks[:, 0:E]                                        # (R, E)
    bneg = masks[:, E:E + G]                                     # (R, G)

    # lane blocks -> channel rows (row index = c*nb + b): static lane slices
    # plus a sublane concat (both proven-cheap layout ops at this size).
    xc = jnp.concatenate(
        [x_slab[:, c * L:(c + 1) * L] for c in range(C)], axis=0)   # (nb*C, L)

    # --- LayerNorm over the last axis (two-pass variance) ---
    mean = jnp.mean(xc, axis=-1, keepdims=True)
    xm = xc - mean
    var = jnp.mean(xm * xm, axis=-1, keepdims=True)
    xn = xm * jax.lax.rsqrt(var + LN_EPS) * gamma + beta         # (nb*C, L)

    # --- to_qkv (1x1 conv) for the whole batch block: ONE matmul ---
    qkv = jnp.dot(w1_ref[...].astype(f32), xn,
                  preferred_element_type=f32)                    # (3G, E)
    q_all, k_all, v_all = qkv[0:G], qkv[G:2 * G], qkv[2 * G:3 * G]

    # --- MHA in-proj (softmax scale pre-folded into Wq^T / bq) ---
    qp = jnp.dot(q_all, wproj_ref[0].astype(f32), preferred_element_type=f32) + bq
    kp = jnp.dot(k_all, wproj_ref[1].astype(f32), preferred_element_type=f32) + bk
    vp = jnp.dot(v_all, wproj_ref[2].astype(f32), preferred_element_type=f32) + bv

    # --- stacked (head x batch) attention: ONE score matmul / softmax / P@V ---
    q_stack = jnp.concatenate([qp] * num_heads, axis=0) * hmask  # (R, E)
    scores = jax.lax.dot_general(q_stack, kp, (((1,), (1,)), ((), ())),
                                 preferred_element_type=f32)     # (R, G)
    if nb > 1:
        scores = scores + bneg            # forbid cross-batch attention
    scores = scores - jnp.max(scores, axis=-1, keepdims=True)
    p = jnp.exp(scores)
    p = p * pl.reciprocal(jnp.sum(p, axis=-1, keepdims=True), approx=True)
    out_all = jnp.dot(p, vp, preferred_element_type=f32) * hmask  # (R, E)

    # --- log-depth head reduction (tile-aligned sublane halving) ---
    t = out_all
    h = num_heads
    while h > 1:
        half = (h // 2) * G
        t = t[:half] + t[half:]
        h //= 2                                                   # -> (G, E)

    # --- MHA out-proj ---
    attn = jnp.dot(t, wproj_ref[3].astype(f32), preferred_element_type=f32) + bo

    # --- to_out (1x1 conv S->C) emitted straight into the lane-dense layout:
    #     per output channel, batch-block matmul then constant placement matmul.
    placed = []
    for c in range(C):
        blk = jnp.dot(wout_ref[c].astype(f32), attn,
                      preferred_element_type=f32)                 # (nb, L)
        placed.append(jnp.dot(blk, pmat_ref[c].astype(f32),
                              preferred_element_type=f32))        # (nb, C*L)
    while len(placed) > 1:                                        # tree add
        placed = [placed[i] + placed[i + 1] for i in range(0, len(placed) - 1, 2)] + \
                 (placed[-1:] if len(placed) % 2 else [])
    out_conv = placed[0]

    out_slab = out_conv + bias_ref[...].astype(f32) + x_slab      # + residual
    o_ref[...] = out_slab.reshape(1, nb, CL).astype(o_ref.dtype)


def self_attention_pallas(x, p, num_heads=NUM_HEADS, batch_block=None):
    B, C, L = x.shape
    E = L
    S = p["w_qkv"].shape[0] // 3      # hidden_dim == attention sequence length
    assert E % num_heads == 0, "vector_size must be divisible by num_heads"
    assert num_heads & (num_heads - 1) == 0, "num_heads must be a power of two"
    assert p["w_in"].shape == (3 * E, E) and p["w_out"].shape == (C, S)
    head_dim = E // num_heads
    scale = 1.0 / math.sqrt(head_dim)
    f32 = jnp.float32

    # batch tiling: one grid step on single-TC chips; exactly two "parallel"
    # steps on multi-TC chips so each TensorCore gets half the batch.
    if batch_block is None:
        if _multi_tensorcore_chip() and B > 1 and B % 2 == 0:
            batch_block = B // 2
        else:
            batch_block = B
    nb = batch_block
    assert B % nb == 0
    steps = B // nb
    G = nb * S
    R = num_heads * G
    CL = C * L

    eye_b = jnp.eye(nb, dtype=f32)

    # to_qkv batch-block weight: rows ordered (q|k|v, batch, s), cols (c, batch)
    w1 = jnp.einsum("gsc,bd->gbscd", p["w_qkv"].astype(f32).reshape(3, S, C),
                    eye_b).reshape(3 * G, nb * C)

    # MHA projection weights (softmax scale folded into the Q projection)
    w_in = p["w_in"].astype(f32)
    wproj = jnp.stack([w_in[:E].T * scale, w_in[E:2 * E].T, w_in[2 * E:].T,
                       p["w_op"].astype(f32).T], axis=0)              # (4, E, E)
    vecs = jnp.stack([p["gamma"], p["beta"], p["b_in"][:E] * scale,
                      p["b_in"][E:2 * E], p["b_in"][2 * E:], p["b_op"]],
                     axis=0).astype(f32)                              # (6, E)

    # constant masks: per-head lane mask | additive cross-batch score bias
    row_head = jnp.arange(R, dtype=jnp.int32) // G
    col_head = jnp.arange(E, dtype=jnp.int32) // head_dim
    hmask = (row_head[:, None] == col_head[None, :]).astype(f32)      # (R, E)
    row_b = (jnp.arange(R, dtype=jnp.int32) // S) % nb
    col_b = jnp.arange(G, dtype=jnp.int32) // S
    bneg = jnp.where(row_b[:, None] == col_b[None, :], 0.0, NEG_INF).astype(f32)
    masks = jnp.concatenate([hmask, bneg], axis=1)                    # (R, E+G)

    # to_out conv: per-channel batch-block weights, lane-block placement
    # matrices, and lane-dense bias.
    wout = jnp.einsum("cs,bd->cbds", p["w_out"].astype(f32),
                      eye_b).reshape(C, nb, G)                        # (C, nb, G)
    pmat = (jnp.arange(CL)[None, None, :] ==
            (jnp.arange(C)[:, None, None] * L +
             jnp.arange(L)[None, :, None])).astype(f32)               # (C, L, CL)
    bias_slab = jnp.repeat(p["b_out"].astype(f32), L)[None, :]        # (1, C*L)

    weights = [w1, wproj, vecs, masks, wout, pmat, bias_slab]

    # lane-dense slabs: last dim C*L (=128 at the reference sizes) so kernel
    # stores are full-width rows instead of masked 32-lane partial stores.
    x_slab = x.reshape(steps, nb, CL)

    def full_spec(shape):
        n = len(shape)
        return pl.BlockSpec(shape, lambda i, _n=n: (0,) * _n)

    in_specs = [pl.BlockSpec((1, nb, CL), lambda i: (i, 0, 0))]
    in_specs += [full_spec(w.shape) for w in weights]
    out_specs = pl.BlockSpec((1, nb, CL), lambda i: (i, 0, 0))

    out = pl.pallas_call(
        partial(_self_attention_kernel, num_heads=num_heads, dim=C),
        out_shape=jax.ShapeDtypeStruct((steps, nb, CL), x.dtype),
        grid_spec=pltpu.PrefetchScalarGridSpec(
            num_scalar_prefetch=0,
            grid=(steps,),
            in_specs=in_specs,
            out_specs=out_specs,
        ),
        compiler_params=pltpu.CompilerParams(
            dimension_semantics=("parallel",)),
    )(x_slab, *weights)
    return out.reshape(B, C, L)


def init_params(key, vector_size, dim, hidden_dim):
    """Raw parameters mirroring the PyTorch module's tensors."""
    E, H, C = vector_size, hidden_dim, dim
    ks = jax.random.split(key, 9)
    s = 0.1
    return dict(
        w_qkv=jax.random.normal(ks[0], (3 * H, C), jnp.float32) * s,   # Conv1d(dim, 3H, 1), no bias
        w_in=jax.random.normal(ks[1], (3 * E, E), jnp.float32) * s,    # MHA in_proj_weight
        b_in=jax.random.normal(ks[2], (3 * E,), jnp.float32) * s,      # MHA in_proj_bias
        w_op=jax.random.normal(ks[3], (E, E), jnp.float32) * s,        # MHA out_proj.weight
        b_op=jax.random.normal(ks[4], (E,), jnp.float32) * s,          # MHA out_proj.bias
        w_out=jax.random.normal(ks[5], (C, H), jnp.float32) * s,       # Conv1d(H, dim, 1).weight
        b_out=jax.random.normal(ks[6], (C,), jnp.float32) * s,         # Conv1d(H, dim, 1).bias
        gamma=1.0 + 0.05 * jax.random.normal(ks[7], (E,), jnp.float32),  # LayerNorm weight
        beta=0.05 * jax.random.normal(ks[8], (E,), jnp.float32),         # LayerNorm bias
    )


def reference(x, p, num_heads=NUM_HEADS):
    """Pure-JAX mirror of the PyTorch forward (reshape-based multi-head attn)."""
    E = p["gamma"].shape[0]
    H = p["w_qkv"].shape[0] // 3
    mean = x.mean(-1, keepdims=True)
    var = ((x - mean) ** 2).mean(-1, keepdims=True)
    xn = (x - mean) / jnp.sqrt(var + LN_EPS) * p["gamma"] + p["beta"]
    qkv = jnp.einsum("oc,bcl->bol", p["w_qkv"], xn)
    q, k, v = qkv[:, :H], qkv[:, H:2 * H], qkv[:, 2 * H:]
    qp = q @ p["w_in"][:E].T + p["b_in"][:E]
    kp = k @ p["w_in"][E:2 * E].T + p["b_in"][E:2 * E]
    vp = v @ p["w_in"][2 * E:].T + p["b_in"][2 * E:]
    B, S, Em = qp.shape
    HD = Em // num_heads

    def split(t):
        return t.reshape(B, S, num_heads, HD).transpose(0, 2, 1, 3)

    qh, kh, vh = split(qp), split(kp), split(vp)
    s = jnp.einsum("bnik,bnjk->bnij", qh, kh) / math.sqrt(HD)
    pr = jax.nn.softmax(s, axis=-1)
    oh = jnp.einsum("bnij,bnjk->bnik", pr, vh)
    o = oh.transpose(0, 2, 1, 3).reshape(B, S, Em)
    o = o @ p["w_op"].T + p["b_op"]
    out = jnp.einsum("ch,bhl->bcl", p["w_out"], o) + p["b_out"][None, :, None]
    return out + x


if __name__ == "__main__":
    batch, dim, vector_size, hidden_dim = 2, 4, 32, 8   # vector_size % 8 == 0 (8 heads)
    key = jax.random.PRNGKey(0)
    kx, kp = jax.random.split(key)
    x = jax.random.normal(kx, (batch, dim, vector_size), jnp.float32)
    params = init_params(kp, vector_size, dim, hidden_dim)

    out = self_attention_pallas(x, params)
    out = jax.block_until_ready(out)

    ref = reference(x, params)
    assert out.shape == (batch, dim, vector_size)
    # tolerance loosened slightly for pl.reciprocal(approx=True) in the softmax
    np.testing.assert_allclose(np.asarray(out), np.asarray(ref),
                               rtol=2e-3, atol=2e-3)
    print("KERNEL_OK")
</pallas_src>

<mosaic_0001>
module attributes {stable_mosaic.version = 11 : i64} {
  func.func @_self_attention_kernel(%arg0: i32, %arg1: memref<1x2x128xf32, #tpu.memory_space<vmem>>, %arg2: memref<48x8xf32, #tpu.memory_space<vmem>>, %arg3: memref<4x32x32xf32, #tpu.memory_space<vmem>>, %arg4: memref<6x32xf32, #tpu.memory_space<vmem>>, %arg5: memref<128x48xf32, #tpu.memory_space<vmem>>, %arg6: memref<4x2x16xf32, #tpu.memory_space<vmem>>, %arg7: memref<4x32x128xf32, #tpu.memory_space<vmem>>, %arg8: memref<1x128xf32, #tpu.memory_space<vmem>>, %arg9: memref<1x2x128xf32, #tpu.memory_space<vmem>>) attributes {dimension_semantics = [#tpu.dimension_semantics<parallel>], iteration_bounds = array<i64: 1>, scalar_prefetch = 0 : i64, scratch_operands = 0 : i64, tpu.core_type = #tpu.core_type<tc>, window_params = [{transform_indices = @transform_0, window_bounds = array<i64: 1, 2, 128>}, {pipeline_mode = #tpu.pipeline_mode<synchronous>, transform_indices = @transform_1, window_bounds = array<i64: 48, 8>}, {pipeline_mode = #tpu.pipeline_mode<synchronous>, transform_indices = @transform_2, window_bounds = array<i64: 4, 32, 32>}, {pipeline_mode = #tpu.pipeline_mode<synchronous>, transform_indices = @transform_3, window_bounds = array<i64: 6, 32>}, {pipeline_mode = #tpu.pipeline_mode<synchronous>, transform_indices = @transform_4, window_bounds = array<i64: 128, 48>}, {pipeline_mode = #tpu.pipeline_mode<synchronous>, transform_indices = @transform_5, window_bounds = array<i64: 4, 2, 16>}, {pipeline_mode = #tpu.pipeline_mode<synchronous>, transform_indices = @transform_6, window_bounds = array<i64: 4, 32, 128>}, {pipeline_mode = #tpu.pipeline_mode<synchronous>, transform_indices = @transform_7, window_bounds = array<i64: 1, 128>}, {transform_indices = @transform_8, window_bounds = array<i64: 1, 2, 128>}]} {
    %c0 = arith.constant 0 : index
    %c0_0 = arith.constant 0 : index
    %c0_1 = arith.constant 0 : index
    %0 = vector.load %arg1[%c0, %c0_0, %c0_1] : memref<1x2x128xf32, #tpu.memory_space<vmem>>, vector<1x2x128xf32>
    %1 = vector.shape_cast %0 : vector<1x2x128xf32> to vector<2x128xf32>
    %c0_2 = arith.constant 0 : index
    %c0_3 = arith.constant 0 : index
    %2 = vector.load %arg4[%c0_2, %c0_3] : memref<6x32xf32, #tpu.memory_space<vmem>>, vector<6x32xf32>
    %3 = vector.extract_strided_slice %2 {offsets = [0, 0], sizes = [1, 32], strides = [1, 1]} : vector<6x32xf32> to vector<1x32xf32>
    %4 = vector.extract_strided_slice %2 {offsets = [1, 0], sizes = [1, 32], strides = [1, 1]} : vector<6x32xf32> to vector<1x32xf32>
    %5 = vector.extract_strided_slice %2 {offsets = [2, 0], sizes = [1, 32], strides = [1, 1]} : vector<6x32xf32> to vector<1x32xf32>
    %6 = vector.extract_strided_slice %2 {offsets = [3, 0], sizes = [1, 32], strides = [1, 1]} : vector<6x32xf32> to vector<1x32xf32>
    %7 = vector.extract_strided_slice %2 {offsets = [4, 0], sizes = [1, 32], strides = [1, 1]} : vector<6x32xf32> to vector<1x32xf32>
    %8 = vector.extract_strided_slice %2 {offsets = [5, 0], sizes = [1, 32], strides = [1, 1]} : vector<6x32xf32> to vector<1x32xf32>
    %c0_4 = arith.constant 0 : index
    %c0_5 = arith.constant 0 : index
    %9 = vector.load %arg5[%c0_4, %c0_5] : memref<128x48xf32, #tpu.memory_space<vmem>>, vector<128x48xf32>
    %10 = vector.extract_strided_slice %9 {offsets = [0, 0], sizes = [128, 32], strides = [1, 1]} : vector<128x48xf32> to vector<128x32xf32>
    %11 = vector.extract_strided_slice %9 {offsets = [0, 32], sizes = [128, 16], strides = [1, 1]} : vector<128x48xf32> to vector<128x16xf32>
    %12 = vector.extract_strided_slice %1 {offsets = [0, 0], sizes = [2, 32], strides = [1, 1]} : vector<2x128xf32> to vector<2x32xf32>
    %13 = vector.extract_strided_slice %1 {offsets = [0, 32], sizes = [2, 32], strides = [1, 1]} : vector<2x128xf32> to vector<2x32xf32>
    %14 = vector.extract_strided_slice %1 {offsets = [0, 64], sizes = [2, 32], strides = [1, 1]} : vector<2x128xf32> to vector<2x32xf32>
    %15 = vector.extract_strided_slice %1 {offsets = [0, 96], sizes = [2, 32], strides = [1, 1]} : vector<2x128xf32> to vector<2x32xf32>
    %16 = tpu.concatenate %12, %13, %14, %15 in 0 : vector<2x32xf32>, vector<2x32xf32>, vector<2x32xf32>, vector<2x32xf32> -> vector<8x32xf32>
    %cst = arith.constant dense<0.000000e+00> : vector<8xf32>
    %17 = vector.multi_reduction <add>, %16, %cst [1] : vector<8x32xf32> to vector<8xf32>
    %18 = vector.shape_cast %17 : vector<8xf32> to vector<8x1xf32>
    %cst_6 = arith.constant 3.200000e+01 : f32
    %19 = vector.broadcast %cst_6 : f32 to vector<8x1xf32>
    %20 = arith.divf %18, %19 : vector<8x1xf32>
    %21 = vector.broadcast %20 : vector<8x1xf32> to vector<8x32xf32>
    %22 = arith.subf %16, %21 : vector<8x32xf32>
    %23 = arith.mulf %22, %22 : vector<8x32xf32>
    %cst_7 = arith.constant dense<0.000000e+00> : vector<8xf32>
    %24 = vector.multi_reduction <add>, %23, %cst_7 [1] : vector<8x32xf32> to vector<8xf32>
    %25 = vector.shape_cast %24 : vector<8xf32> to vector<8x1xf32>
    %cst_8 = arith.constant 3.200000e+01 : f32
    %26 = vector.broadcast %cst_8 : f32 to vector<8x1xf32>
    %27 = arith.divf %25, %26 : vector<8x1xf32>
    %cst_9 = arith.constant 9.99999974E-6 : f32
    %28 = vector.broadcast %cst_9 : f32 to vector<8x1xf32>
    %29 = arith.addf %27, %28 : vector<8x1xf32>
    %30 = math.rsqrt %29 : vector<8x1xf32>
    %31 = vector.broadcast %30 : vector<8x1xf32> to vector<8x32xf32>
    %32 = arith.mulf %22, %31 : vector<8x32xf32>
    %33 = vector.broadcast %3 : vector<1x32xf32> to vector<8x32xf32>
    %34 = arith.mulf %32, %33 : vector<8x32xf32>
    %35 = vector.broadcast %4 : vector<1x32xf32> to vector<8x32xf32>
    %36 = arith.addf %34, %35 : vector<8x32xf32>
    %c0_10 = arith.constant 0 : index
    %c0_11 = arith.constant 0 : index
    %37 = vector.load %arg2[%c0_10, %c0_11] : memref<48x8xf32, #tpu.memory_space<vmem>>, vector<48x8xf32>
    %cst_12 = arith.constant dense<0.000000e+00> : vector<48x32xf32>
    %38 = tpu.matmul %37, %36, %cst_12 {dimension_numbers = #tpu.dot_dimension_numbers<[1], [0], [0], [1], [0, 0, 1, 1], [], []>} : vector<48x8xf32>, vector<8x32xf32>, vector<48x32xf32> -> vector<48x32xf32>
    %39 = vector.extract_strided_slice %38 {offsets = [0, 0], sizes = [16, 32], strides = [1, 1]} : vector<48x32xf32> to vector<16x32xf32>
    %40 = vector.extract_strided_slice %38 {offsets = [16, 0], sizes = [16, 32], strides = [1, 1]} : vector<48x32xf32> to vector<16x32xf32>
    %41 = vector.extract_strided_slice %38 {offsets = [32, 0], sizes = [16, 32], strides = [1, 1]} : vector<48x32xf32> to vector<16x32xf32>
    %c0_13 = arith.constant 0 : index
    %c0_14 = arith.constant 0 : index
    %c0_15 = arith.constant 0 : index
    %42 = vector.load %arg3[%c0_13, %c0_14, %c0_15] : memref<4x32x32xf32, #tpu.memory_space<vmem>>, vector<1x32x32xf32>
    %43 = vector.shape_cast %42 : vector<1x32x32xf32> to vector<32x32xf32>
    %cst_16 = arith.constant dense<0.000000e+00> : vector<16x32xf32>
    %44 = tpu.matmul %39, %43, %cst_16 {dimension_numbers = #tpu.dot_dimension_numbers<[1], [0], [0], [1], [0, 0, 1, 1], [], []>} : vector<16x32xf32>, vector<32x32xf32>, vector<16x32xf32> -> vector<16x32xf32>
    %45 = vector.broadcast %5 : vector<1x32xf32> to vector<16x32xf32>
    %46 = arith.addf %44, %45 : vector<16x32xf32>
    %c1 = arith.constant 1 : index
    %c0_17 = arith.constant 0 : index
    %c0_18 = arith.constant 0 : index
    %47 = vector.load %arg3[%c1, %c0_17, %c0_18] : memref<4x32x32xf32, #tpu.memory_space<vmem>>, vector<1x32x32xf32>
    %48 = vector.shape_cast %47 : vector<1x32x32xf32> to vector<32x32xf32>
    %cst_19 = arith.constant dense<0.000000e+00> : vector<16x32xf32>
    %49 = tpu.matmul %40, %48, %cst_19 {dimension_numbers = #tpu.dot_dimension_numbers<[1], [0], [0], [1], [0, 0, 1, 1], [], []>} : vector<16x32xf32>, vector<32x32xf32>, vector<16x32xf32> -> vector<16x32xf32>
    %50 = vector.broadcast %6 : vector<1x32xf32> to vector<16x32xf32>
    %51 = arith.addf %49, %50 : vector<16x32xf32>
    %c2 = arith.constant 2 : index
    %c0_20 = arith.constant 0 : index
    %c0_21 = arith.constant 0 : index
    %52 = vector.load %arg3[%c2, %c0_20, %c0_21] : memref<4x32x32xf32, #tpu.memory_space<vmem>>, vector<1x32x32xf32>
    %53 = vector.shape_cast %52 : vector<1x32x32xf32> to vector<32x32xf32>
    %cst_22 = arith.constant dense<0.000000e+00> : vector<16x32xf32>
    %54 = tpu.matmul %41, %53, %cst_22 {dimension_numbers = #tpu.dot_dimension_numbers<[1], [0], [0], [1], [0, 0, 1, 1], [], []>} : vector<16x32xf32>, vector<32x32xf32>, vector<16x32xf32> -> vector<16x32xf32>
    %55 = vector.broadcast %7 : vector<1x32xf32> to vector<16x32xf32>
    %56 = arith.addf %54, %55 : vector<16x32xf32>
    %57 = tpu.concatenate %46, %46, %46, %46, %46, %46, %46, %46 in 0 : vector<16x32xf32>, vector<16x32xf32>, vector<16x32xf32>, vector<16x32xf32>, vector<16x32xf32>, vector<16x32xf32>, vector<16x32xf32>, vector<16x32xf32> -> vector<128x32xf32>
    %58 = arith.mulf %57, %10 : vector<128x32xf32>
    %cst_23 = arith.constant dense<0.000000e+00> : vector<128x16xf32>
    %59 = tpu.matmul %58, %51, %cst_23 {dimension_numbers = #tpu.dot_dimension_numbers<[1], [1], [0], [0], [0, 0, 1, 0], [], []>} : vector<128x32xf32>, vector<16x32xf32>, vector<128x16xf32> -> vector<128x16xf32>
    %60 = arith.addf %59, %11 : vector<128x16xf32>
    %cst_24 = arith.constant dense<0xFF800000> : vector<128xf32>
    %61 = vector.multi_reduction <maximumf>, %60, %cst_24 [1] : vector<128x16xf32> to vector<128xf32>
    %62 = vector.shape_cast %61 : vector<128xf32> to vector<128x1xf32>
    %63 = vector.broadcast %62 : vector<128x1xf32> to vector<128x16xf32>
    %64 = arith.subf %60, %63 : vector<128x16xf32>
    %65 = math.exp %64 : vector<128x16xf32>
    %cst_25 = arith.constant dense<0.000000e+00> : vector<128xf32>
    %66 = vector.multi_reduction <add>, %65, %cst_25 [1] : vector<128x16xf32> to vector<128xf32>
    %67 = vector.shape_cast %66 : vector<128xf32> to vector<128x1xf32>
    %68 = tpu.reciprocal %67 {approx = true} : vector<128x1xf32> -> vector<128x1xf32>
    %69 = vector.broadcast %68 : vector<128x1xf32> to vector<128x16xf32>
    %70 = arith.mulf %65, %69 : vector<128x16xf32>
    %cst_26 = arith.constant dense<0.000000e+00> : vector<128x32xf32>
    %71 = tpu.matmul %70, %56, %cst_26 {dimension_numbers = #tpu.dot_dimension_numbers<[1], [0], [0], [1], [0, 0, 1, 1], [], []>} : vector<128x16xf32>, vector<16x32xf32>, vector<128x32xf32> -> vector<128x32xf32>
    %72 = arith.mulf %71, %10 : vector<128x32xf32>
    %73 = vector.extract_strided_slice %72 {offsets = [0, 0], sizes = [64, 32], strides = [1, 1]} : vector<128x32xf32> to vector<64x32xf32>
    %74 = vector.extract_strided_slice %72 {offsets = [64, 0], sizes = [64, 32], strides = [1, 1]} : vector<128x32xf32> to vector<64x32xf32>
    %75 = arith.addf %73, %74 : vector<64x32xf32>
    %76 = vector.extract_strided_slice %75 {offsets = [0, 0], sizes = [32, 32], strides = [1, 1]} : vector<64x32xf32> to vector<32x32xf32>
    %77 = vector.extract_strided_slice %75 {offsets = [32, 0], sizes = [32, 32], strides = [1, 1]} : vector<64x32xf32> to vector<32x32xf32>
    %78 = arith.addf %76, %77 : vector<32x32xf32>
    %79 = vector.extract_strided_slice %78 {offsets = [0, 0], sizes = [16, 32], strides = [1, 1]} : vector<32x32xf32> to vector<16x32xf32>
    %80 = vector.extract_strided_slice %78 {offsets = [16, 0], sizes = [16, 32], strides = [1, 1]} : vector<32x32xf32> to vector<16x32xf32>
    %81 = arith.addf %79, %80 : vector<16x32xf32>
    %c3 = arith.constant 3 : index
    %c0_27 = arith.constant 0 : index
    %c0_28 = arith.constant 0 : index
    %82 = vector.load %arg3[%c3, %c0_27, %c0_28] : memref<4x32x32xf32, #tpu.memory_space<vmem>>, vector<1x32x32xf32>
    %83 = vector.shape_cast %82 : vector<1x32x32xf32> to vector<32x32xf32>
    %cst_29 = arith.constant dense<0.000000e+00> : vector<16x32xf32>
    %84 = tpu.matmul %81, %83, %cst_29 {dimension_numbers = #tpu.dot_dimension_numbers<[1], [0], [0], [1], [0, 0, 1, 1], [], []>} : vector<16x32xf32>, vector<32x32xf32>, vector<16x32xf32> -> vector<16x32xf32>
    %85 = vector.broadcast %8 : vector<1x32xf32> to vector<16x32xf32>
    %86 = arith.addf %84, %85 : vector<16x32xf32>
    %c0_30 = arith.constant 0 : index
    %c0_31 = arith.constant 0 : index
    %c0_32 = arith.constant 0 : index
    %87 = vector.load %arg6[%c0_30, %c0_31, %c0_32] : memref<4x2x16xf32, #tpu.memory_space<vmem>>, vector<1x2x16xf32>
    %88 = vector.shape_cast %87 : vector<1x2x16xf32> to vector<2x16xf32>
    %cst_33 = arith.constant dense<0.000000e+00> : vector<2x32xf32>
    %89 = tpu.matmul %88, %86, %cst_33 {dimension_numbers = #tpu.dot_dimension_numbers<[1], [0], [0], [1], [0, 0, 1, 1], [], []>} : vector<2x16xf32>, vector<16x32xf32>, vector<2x32xf32> -> vector<2x32xf32>
    %c0_34 = arith.constant 0 : index
    %c0_35 = arith.constant 0 : index
    %c0_36 = arith.constant 0 : index
    %90 = vector.load %arg7[%c0_34, %c0_35, %c0_36] : memref<4x32x128xf32, #tpu.memory_space<vmem>>, vector<1x32x128xf32>
    %91 = vector.shape_cast %90 : vector<1x32x128xf32> to vector<32x128xf32>
    %cst_37 = arith.constant dense<0.000000e+00> : vector<2x128xf32>
    %92 = tpu.matmul %89, %91, %cst_37 {dimension_numbers = #tpu.dot_dimension_numbers<[1], [0], [0], [1], [0, 0, 1, 1], [], []>} : vector<2x32xf32>, vector<32x128xf32>, vector<2x128xf32> -> vector<2x128xf32>
    %c1_38 = arith.constant 1 : index
    %c0_39 = arith.constant 0 : index
    %c0_40 = arith.constant 0 : index
    %93 = vector.load %arg6[%c1_38, %c0_39, %c0_40] : memref<4x2x16xf32, #tpu.memory_space<vmem>>, vector<1x2x16xf32>
    %94 = vector.shape_cast %93 : vector<1x2x16xf32> to vector<2x16xf32>
    %cst_41 = arith.constant dense<0.000000e+00> : vector<2x32xf32>
    %95 = tpu.matmul %94, %86, %cst_41 {dimension_numbers = #tpu.dot_dimension_numbers<[1], [0], [0], [1], [0, 0, 1, 1], [], []>} : vector<2x16xf32>, vector<16x32xf32>, vector<2x32xf32> -> vector<2x32xf32>
    %c1_42 = arith.constant 1 : index
    %c0_43 = arith.constant 0 : index
    %c0_44 = arith.constant 0 : index
    %96 = vector.load %arg7[%c1_42, %c0_43, %c0_44] : memref<4x32x128xf32, #tpu.memory_space<vmem>>, vector<1x32x128xf32>
    %97 = vector.shape_cast %96 : vector<1x32x128xf32> to vector<32x128xf32>
    %cst_45 = arith.constant dense<0.000000e+00> : vector<2x128xf32>
    %98 = tpu.matmul %95, %97, %cst_45 {dimension_numbers = #tpu.dot_dimension_numbers<[1], [0], [0], [1], [0, 0, 1, 1], [], []>} : vector<2x32xf32>, vector<32x128xf32>, vector<2x128xf32> -> vector<2x128xf32>
    %c2_46 = arith.constant 2 : index
    %c0_47 = arith.constant 0 : index
    %c0_48 = arith.constant 0 : index
    %99 = vector.load %arg6[%c2_46, %c0_47, %c0_48] : memref<4x2x16xf32, #tpu.memory_space<vmem>>, vector<1x2x16xf32>
    %100 = vector.shape_cast %99 : vector<1x2x16xf32> to vector<2x16xf32>
    %cst_49 = arith.constant dense<0.000000e+00> : vector<2x32xf32>
    %101 = tpu.matmul %100, %86, %cst_49 {dimension_numbers = #tpu.dot_dimension_numbers<[1], [0], [0], [1], [0, 0, 1, 1], [], []>} : vector<2x16xf32>, vector<16x32xf32>, vector<2x32xf32> -> vector<2x32xf32>
    %c2_50 = arith.constant 2 : index
    %c0_51 = arith.constant 0 : index
    %c0_52 = arith.constant 0 : index
    %102 = vector.load %arg7[%c2_50, %c0_51, %c0_52] : memref<4x32x128xf32, #tpu.memory_space<vmem>>, vector<1x32x128xf32>
    %103 = vector.shape_cast %102 : vector<1x32x128xf32> to vector<32x128xf32>
    %cst_53 = arith.constant dense<0.000000e+00> : vector<2x128xf32>
    %104 = tpu.matmul %101, %103, %cst_53 {dimension_numbers = #tpu.dot_dimension_numbers<[1], [0], [0], [1], [0, 0, 1, 1], [], []>} : vector<2x32xf32>, vector<32x128xf32>, vector<2x128xf32> -> vector<2x128xf32>
    %c3_54 = arith.constant 3 : index
    %c0_55 = arith.constant 0 : index
    %c0_56 = arith.constant 0 : index
    %105 = vector.load %arg6[%c3_54, %c0_55, %c0_56] : memref<4x2x16xf32, #tpu.memory_space<vmem>>, vector<1x2x16xf32>
    %106 = vector.shape_cast %105 : vector<1x2x16xf32> to vector<2x16xf32>
    %cst_57 = arith.constant dense<0.000000e+00> : vector<2x32xf32>
    %107 = tpu.matmul %106, %86, %cst_57 {dimension_numbers = #tpu.dot_dimension_numbers<[1], [0], [0], [1], [0, 0, 1, 1], [], []>} : vector<2x16xf32>, vector<16x32xf32>, vector<2x32xf32> -> vector<2x32xf32>
    %c3_58 = arith.constant 3 : index
    %c0_59 = arith.constant 0 : index
    %c0_60 = arith.constant 0 : index
    %108 = vector.load %arg7[%c3_58, %c0_59, %c0_60] : memref<4x32x128xf32, #tpu.memory_space<vmem>>, vector<1x32x128xf32>
    %109 = vector.shape_cast %108 : vector<1x32x128xf32> to vector<32x128xf32>
    %cst_61 = arith.constant dense<0.000000e+00> : vector<2x128xf32>
    %110 = tpu.matmul %107, %109, %cst_61 {dimension_numbers = #tpu.dot_dimension_numbers<[1], [0], [0], [1], [0, 0, 1, 1], [], []>} : vector<2x32xf32>, vector<32x128xf32>, vector<2x128xf32> -> vector<2x128xf32>
    %111 = arith.addf %92, %98 : vector<2x128xf32>
    %112 = arith.addf %104, %110 : vector<2x128xf32>
    %113 = arith.addf %111, %112 : vector<2x128xf32>
    %c0_62 = arith.constant 0 : index
    %c0_63 = arith.constant 0 : index
    %114 = vector.load %arg8[%c0_62, %c0_63] : memref<1x128xf32, #tpu.memory_space<vmem>>, vector<1x128xf32>
    %115 = vector.broadcast %114 : vector<1x128xf32> to vector<2x128xf32>
    %116 = arith.addf %113, %115 : vector<2x128xf32>
    %117 = arith.addf %116, %1 : vector<2x128xf32>
    %118 = vector.shape_cast %117 : vector<2x128xf32> to vector<1x2x128xf32>
    %c0_64 = arith.constant 0 : index
    %c0_65 = arith.constant 0 : index
    %c0_66 = arith.constant 0 : index
    %119 = vector.load %arg9[%c0_64, %c0_65, %c0_66] : memref<1x2x128xf32, #tpu.memory_space<vmem>>, vector<1x2x128xf32>
    tpu.vector_store %arg9[%c0_64, %c0_65, %c0_66], %118 {strides = array<i32>} : memref<1x2x128xf32, #tpu.memory_space<vmem>>, vector<1x2x128xf32>,
    return
  }
  func.func @transform_0(%arg0: i32) -> (i32, i32, i32) {
    %c0_i32 = arith.constant 0 : i32
    %c0_i32_0 = arith.constant 0 : i32
    %c0_i32_1 = arith.constant 0 : i32
    return %arg0, %c0_i32, %c0_i32_0 : i32, i32, i32
  }
  func.func @transform_1(%arg0: i32) -> (i32, i32) {
    %c0_i32 = arith.constant 0 : i32
    %c0_i32_0 = arith.constant 0 : i32
    %c0_i32_1 = arith.constant 0 : i32
    return %c0_i32, %c0_i32_0 : i32, i32
  }
  func.func @transform_2(%arg0: i32) -> (i32, i32, i32) {
    %c0_i32 = arith.constant 0 : i32
    %c0_i32_0 = arith.constant 0 : i32
    %c0_i32_1 = arith.constant 0 : i32
    %c0_i32_2 = arith.constant 0 : i32
    return %c0_i32, %c0_i32_0, %c0_i32_1 : i32, i32, i32
  }
  func.func @transform_3(%arg0: i32) -> (i32, i32) {
    %c0_i32 = arith.constant 0 : i32
    %c0_i32_0 = arith.constant 0 : i32
    %c0_i32_1 = arith.constant 0 : i32
    return %c0_i32, %c0_i32_0 : i32, i32
  }
  func.func @transform_4(%arg0: i32) -> (i32, i32) {
    %c0_i32 = arith.constant 0 : i32
    %c0_i32_0 = arith.constant 0 : i32
    %c0_i32_1 = arith.constant 0 : i32
    return %c0_i32, %c0_i32_0 : i32, i32
  }
  func.func @transform_5(%arg0: i32) -> (i32, i32, i32) {
    %c0_i32 = arith.constant 0 : i32
    %c0_i32_0 = arith.constant 0 : i32
    %c0_i32_1 = arith.constant 0 : i32
    %c0_i32_2 = arith.constant 0 : i32
    return %c0_i32, %c0_i32_0, %c0_i32_1 : i32, i32, i32
  }
  func.func @transform_6(%arg0: i32) -> (i32, i32, i32) {
    %c0_i32 = arith.constant 0 : i32
    %c0_i32_0 = arith.constant 0 : i32
    %c0_i32_1 = arith.constant 0 : i32
    %c0_i32_2 = arith.constant 0 : i32
    return %c0_i32, %c0_i32_0, %c0_i32_1 : i32, i32, i32
  }
  func.func @transform_7(%arg0: i32) -> (i32, i32) {
    %c0_i32 = arith.constant 0 : i32
    %c0_i32_0 = arith.constant 0 : i32
    %c0_i32_1 = arith.constant 0 : i32
    return %c0_i32, %c0_i32_0 : i32, i32
  }
  func.func @transform_8(%arg0: i32) -> (i32, i32, i32) {
    %c0_i32 = arith.constant 0 : i32
    %c0_i32_0 = arith.constant 0 : i32
    %c0_i32_1 = arith.constant 0 : i32
    return %arg0, %c0_i32, %c0_i32_0 : i32, i32, i32
  }
}

</mosaic_0001>

<llo_original>
// kernel: tpu_custom_call.1
$region0: #{tpu_custom_call.1}
  #allocation0 [shape = 'u32[]', space=smem, size = 0x4, offset = 0x4, fixed_abs, tag = 'smem constant byte address 0x4 - core index']
  #allocation1 [shape = 'u32[144,128]{1,0:T(1,128)}', space=vmem, size = 0x12000, scoped, tag = 'internal scratch']
  %s0 = inlined_call_operand.vmem [shape: f32[1,2,128], index: 0, kind: input, shape index: {}]
  %s1 = inlined_call_operand.vmem [shape: f32[48,8], index: 1, kind: input, shape index: {}]
  %s2 = inlined_call_operand.vmem [shape: f32[4,32,32], index: 2, kind: input, shape index: {}]
  %s3 = inlined_call_operand.vmem [shape: f32[6,32], index: 3, kind: input, shape index: {}]
  %s4 = inlined_call_operand.vmem [shape: f32[128,48], index: 4, kind: input, shape index: {}]
  %s5 = inlined_call_operand.vmem [shape: f32[4,2,16], index: 5, kind: input, shape index: {}]
  %s6 = inlined_call_operand.hbm [shape: f32[4,32,128], index: 6, kind: input, shape index: {}]
  %s7 = inlined_call_operand.vmem [shape: f32[1,128], index: 7, kind: input, shape index: {}]
  %s8 = inlined_call_operand.hbm [shape: f32[1,2,128], index: 8, kind: output, shape index: {}]
  %s9 = sld [smem:[#allocation0]]
  $region46: #{tpu_custom_call.1} parent=0
    _
  %s11 = ssub.s32 1, %s9
  %s12 = scalar_select 0, %s11, %s9
  $region1: #{tpu_custom_call.1} parent=0
    #allocation2 [shape = 'u8[65536]{0}', space=vmem, size = 0x10000, scoped, tag = 'input window, operand 6, single buffered']
    #allocation3 [shape = 's32[1]{0}', space=sflag, size = 0x4, scoped, tag = 'scoped memory for tpu_custom_call.1']
    #allocation4 [shape = 's32[1]{0}', space=sflag, size = 0x4, scoped, tag = 'scoped memory for tpu_custom_call.1']
    #allocation5 [shape = 'u8[1024]{0}', space=vmem, size = 0x400, scoped, tag = 'output window, operand 0, single buffered']
    %13 = vsyncpa [#allocation3], 0
    %14 = vsyncpa [#allocation4], 0
    // Predicated region
    $region2: #{tpu_custom_call.1} parent=1 // pred_check
      _
    $region3: #{tpu_custom_call.1} parent=1 // pred_check_branch
      %16 = sbr.rel (0) target = $region5
    $region4: #{tpu_custom_call.1} parent=1 // pred_region
      _
    $region5: #{tpu_custom_call.1} parent=1 // pred_fallthru
      _
    // Predicated region
    $region6: #{tpu_custom_call.1} parent=1 // pred_check
      _
    $region7: #{tpu_custom_call.1} parent=1 // pred_check_branch
      %18 = sbr.rel (0) target = $region9
    $region8: #{tpu_custom_call.1} parent=1 // pred_region
      _
    $region9: #{tpu_custom_call.1} parent=1 // pred_fallthru
      _
    // Predicated region
    $region10: #{tpu_custom_call.1} parent=1 // pred_check
      _
    $region11: #{tpu_custom_call.1} parent=1 // pred_check_branch
      %20 = sbr.rel (0) target = $region13
    $region12: #{tpu_custom_call.1} parent=1 // pred_region
      _
    $region13: #{tpu_custom_call.1} parent=1 // pred_fallthru
      _
    // Predicated region
    $region14: #{tpu_custom_call.1} parent=1 // pred_check
      _
    $region15: #{tpu_custom_call.1} parent=1 // pred_check_branch
      %22 = sbr.rel (0) target = $region17
    $region16: #{tpu_custom_call.1} parent=1 // pred_region
      _
    $region17: #{tpu_custom_call.1} parent=1 // pred_fallthru
      _
    // Predicated region
    $region18: #{tpu_custom_call.1} parent=1 // pred_check
      _
    $region19: #{tpu_custom_call.1} parent=1 // pred_check_branch
      %24 = sbr.rel (0) target = $region21
    $region20: #{tpu_custom_call.1} parent=1 // pred_region
      _
    $region21: #{tpu_custom_call.1} parent=1 // pred_fallthru
      _
    // Predicated region
    $region22: #{tpu_custom_call.1} parent=1 // pred_check
      _
    $region23: #{tpu_custom_call.1} parent=1 // pred_check_branch
      %26 = sbr.rel (0) target = $region25
    $region24: #{tpu_custom_call.1} parent=1 // pred_region
      _
    $region25: #{tpu_custom_call.1} parent=1 // pred_fallthru
      _
    // Predicated region
    $region26: #{tpu_custom_call.1} parent=1 // pred_check
      _
    $region27: #{tpu_custom_call.1} parent=1 // pred_check_branch
      %28 = sbr.rel (0) target = $region29
    $region28: #{tpu_custom_call.1} parent=1 // pred_region
      %s30 = ssub.s32 2048, 2048
      %31 = vsyncadd [#allocation3], %s30
      %s32 = sshll.u32 [#allocation2], 4
      %s33 = int_to_ptr.vmem [resolvable:$true] %s32
      %38 = dma.hbm_to_vmem [thread:$0]  %s6, 2048, %s33, [#allocation3], 128, 128, 8
    $region29: #{tpu_custom_call.1} parent=1 // pred_fallthru
      _
    // Predicated region
    $region30: #{tpu_custom_call.1} parent=1 // pred_check
      _
    $region31: #{tpu_custom_call.1} parent=1 // pred_check_branch
      %40 = sbr.rel (0) target = $region33
    $region32: #{tpu_custom_call.1} parent=1 // pred_region
      _
    $region33: #{tpu_custom_call.1} parent=1 // pred_fallthru
      _
    // Predicated region
    $region34: #{tpu_custom_call.1} parent=1 // pred_check
      _
    $region35: #{tpu_custom_call.1} parent=1 // pred_check_branch
      %42 = sbr.rel (0) target = $region37
    $region36: #{tpu_custom_call.1} parent=1 // pred_region
      %43 = dma.done [#allocation3], 2048
    $region37: #{tpu_custom_call.1} parent=1 // pred_fallthru
      _
    %v44 = vld [vmem:[%s0] sm:$0x3]
    %v45 = vld [vmem:[%s3] sm:$0x3f]
    %v46 = vld [vmem:[%s4] sm:$0xff]
    %v47 = vld [vmem:[%s4 + $0x8] sm:$0xff]
    %v48 = vld [vmem:[%s4 + $0x10] sm:$0xff]
    %v49 = vld [vmem:[%s4 + $0x18] sm:$0xff]
    %v50 = vld [vmem:[%s4 + $0x20] sm:$0xff]
    %v51 = vld [vmem:[%s4 + $0x28] sm:$0xff]
    %v52 = vld [vmem:[%s4 + $0x30] sm:$0xff]
    %v53 = vld [vmem:[%s4 + $0x38] sm:$0xff]
    %v54 = vld [vmem:[%s4 + $0x40] sm:$0xff]
    %v55 = vld [vmem:[%s4 + $0x48] sm:$0xff]
    %v56 = vld [vmem:[%s4 + $0x50] sm:$0xff]
    %v57 = vld [vmem:[%s4 + $0x58] sm:$0xff]
    %v58 = vld [vmem:[%s4 + $0x60] sm:$0xff]
    %v59 = vld [vmem:[%s4 + $0x68] sm:$0xff]
    %v60 = vld [vmem:[%s4 + $0x70] sm:$0xff]
    %v61 = vld [vmem:[%s4 + $0x78] sm:$0xff]
    %v63 = vrot.slane %v44, 6
    %64 = vrot.lane.b32.xlu0 %v63, 96
    %v65 = vpop.permute.xlu0 %64
    %v67 = vrot.slane %v44, 4
    %68 = vrot.lane.b32.xlu0 %v67, 64
    %v69 = vpop.permute.xlu0 %68
    %v71 = vrot.slane %v44, 2
    %72 = vrot.lane.b32.xlu0 %v71, 32
    %v73 = vpop.permute.xlu0 %72
    %vm75 = vcmask 1041408
    %v76 = vsel %vm75, %v44, %v65
    %vm77 = vcmask 1043456
    %v78 = vsel %vm77, %v76, %v69
    %vm79 = vcmask 1045504
    %v80 = vsel %vm79, %v78, %v73
    %vm81 = vcmask 261120
    %v82 = vsel %vm81, %v80, 0.0
    %83 = vadd.xlane.f32.xlu0 %v82
    %v84 = vpop.xlane.xlu0 %83
    %v85 = vrcp.pop 32.0
    %v86 = vmul.f32 %v84, %v85
    %v87 = vsub.f32 %v80, %v86
    %v88 = vmul.f32 %v87, %v87
    %v89 = vsel %vm81, %v88, 0.0
    %90 = vadd.xlane.f32.xlu0 %v89
    %v91 = vpop.xlane.xlu0 %90
    %v92 = vmul.f32 %v91, %v85
    %v93 = vadd.f32 %v92, 1e-05
    %v94 = vrsqrt.pop %v93
    %v95 = vmul.f32 %v87, %v94
    %v96 = vlaneseq
    %v97 = vshrl.u32 %v96, 7
    %v98 = vsub.s32 0, %v97
    %v99 = vrot.slane %v45, %v98
    %v100 = vmul.f32 %v95, %v99
    %v101 = vlaneseq
    %v102 = vshrl.u32 %v101, 7
    %v103 = vsub.s32 1, %v102
    %v104 = vrot.slane %v45, %v103
    %v105 = vadd.f32 %v100, %v104
    %v106 = vld [vmem:[%s1] sm:$0xff]
    %v107 = vld [vmem:[%s1 + $0x8] sm:$0xff]
    %v108 = vld [vmem:[%s1 + $0x10] sm:$0xff]
    %v109 = vld [vmem:[%s1 + $0x18] sm:$0xff]
    %v110 = vld [vmem:[%s1 + $0x20] sm:$0xff]
    %v111 = vld [vmem:[%s1 + $0x28] sm:$0xff]
    %vm112 = vcmask 64512
    %v114 = vsel %vm112, %v106, 0
    %v117 = vsel %vm112, %v107, 0
    %v120 = vsel %vm112, %v108, 0
    %v123 = vsel %vm112, %v109, 0
    %v126 = vsel %vm112, %v110, 0
    %v129 = vsel %vm112, %v111, 0
    %131 = vmatprep.subr.mxu0 0.0
    %132 = vmatpush1.msra.mxu0 %v105
    %133 = vmatprep.subr.mxu0 0.0
    %134 = vmatpush1.msra.mxu0 0.0
    %135 = vmatprep.subr.mxu0 0.0
    %136 = vmatpush1.msra.mxu0 0.0
    %137 = vmatprep.subr.mxu0 0.0
    %138 = vmatpush1.msra.mxu0 0.0
    %139 = vmatprep.subr.mxu0 0.0
    %140 = vmatpush1.msra.mxu0 0.0
    %141 = vmatprep.subr.mxu0 0.0
    %142 = vmatpush1.msra.mxu0 0.0
    %143 = vmatprep.subr.mxu0 0.0
    %144 = vmatpush1.msra.mxu0 0.0
    %145 = vmatprep.subr.mxu0 0.0
    %146 = vmatpush1.msra.mxu0 0.0
    %147 = vmatprep.subr.mxu0 0.0
    %148 = vmatpush1.msra.mxu0 0.0
    %149 = vmatprep.subr.mxu0 0.0
    %150 = vmatpush1.msra.mxu0 0.0
    %151 = vmatprep.subr.mxu0 0.0
    %152 = vmatpush1.msra.mxu0 0.0
    %153 = vmatprep.subr.mxu0 0.0
    %154 = vmatpush1.msra.mxu0 0.0
    %155 = vmatprep.subr.mxu0 0.0
    %156 = vmatpush1.msra.mxu0 0.0
    %157 = vmatprep.subr.mxu0 0.0
    %158 = vmatpush1.msra.mxu0 0.0
    %159 = vmatprep.subr.mxu0 0.0
    %160 = vmatpush1.msra.mxu0 0.0
    %161 = vmatprep.subr.mxu0 0.0
    %162 = vmatpush1.msra.mxu0 0.0
    %163 = vmatprep.subr.mxu0 0.0
    %164 = vmatpush1.msra.mxu0 0.0
    %165 = vmatprep.subr.mxu0 0.0
    %166 = vmatpush1.msra.mxu0 0.0
    %167 = vmatprep.subr.mxu0 0.0
    %168 = vmatpush1.msra.mxu0 0.0
    %169 = vmatprep.subr.mxu0 0.0
    %170 = vmatpush1.msra.mxu0 0.0
    %171 = vmatprep.subr.mxu0 0.0
    %172 = vmatpush1.msra.mxu0 0.0
    %173 = vmatprep.subr.mxu0 0.0
    %174 = vmatpush1.msra.mxu0 0.0
    %175 = vmatprep.subr.mxu0 0.0
    %176 = vmatpush1.msra.mxu0 0.0
    %177 = vmatprep.subr.mxu0 0.0
    %178 = vmatpush1.msra.mxu0 0.0
    %179 = vmatprep.subr.mxu0 0.0
    %180 = vmatpush1.msra.mxu0 0.0
    %181 = vmatprep.subr.mxu0 0.0
    %182 = vmatpush1.msra.mxu0 0.0
    %183 = vmatprep.subr.mxu0 0.0
    %184 = vmatpush1.msra.mxu0 0.0
    %185 = vmatprep.subr.mxu0 0.0
    %186 = vmatpush1.msra.mxu0 0.0
    %187 = vmatprep.subr.mxu0 0.0
    %188 = vmatpush1.msra.mxu0 0.0
    %189 = vmatprep.subr.mxu0 0.0
    %190 = vmatpush1.msra.mxu0 0.0
    %191 = vmatprep.subr.mxu0 0.0
    %192 = vmatpush1.msra.mxu0 0.0
    %193 = vmatprep.subr.mxu0 0.0
    %194 = vmatpush1.msra.mxu0 0.0
    %195 = vmatprep.mubr.f32.mxu0 0.0
    %196 = vmatmul.mubr.f32.gmra.mrb[0].mxu0 %v114
    %v197 = vpop.f32.mrb[0].mxu0
    %v198 = vadd.f32 0.0, %v197
    %v199 = vpop.f32.mrb[0].mxu0
    %200 = vmatprep.mubr.f32.mxu0 0.0
    %201 = vmatmul.mubr.f32.gmra.mrb[0].mxu0 %v117
    %v202 = vpop.f32.mrb[0].mxu0
    %v203 = vadd.f32 0.0, %v202
    %v204 = vpop.f32.mrb[0].mxu0
    %205 = vmatprep.mubr.f32.mxu0 0.0
    %206 = vmatmul.mubr.f32.gmra.mrb[0].mxu0 %v120
    %v207 = vpop.f32.mrb[0].mxu0
    %v208 = vadd.f32 0.0, %v207
    %v209 = vpop.f32.mrb[0].mxu0
    %210 = vmatprep.mubr.f32.mxu0 0.0
    %211 = vmatmul.mubr.f32.gmra.mrb[0].mxu0 %v123
    %v212 = vpop.f32.mrb[0].mxu0
    %v213 = vadd.f32 0.0, %v212
    %v214 = vpop.f32.mrb[0].mxu0
    %215 = vmatprep.mubr.f32.mxu0 0.0
    %216 = vmatmul.mubr.f32.gmra.mrb[0].mxu0 %v126
    %v217 = vpop.f32.mrb[0].mxu0
    %v218 = vadd.f32 0.0, %v217
    %v219 = vpop.f32.mrb[0].mxu0
    %220 = vmatprep.mubr.f32.mxu0 0.0
    %221 = vmatmul.mubr.f32.gmra.mrb[0].mxu0 %v129
    %v222 = vpop.f32.mrb[0].mxu0
    %v223 = vadd.f32 0.0, %v222
    %v224 = vpop.f32.mrb[0].mxu0
    %225 = vdwg.mxu0
    %v226 = vld [vmem:[%s2] sm:$0xff]
    %v227 = vld [vmem:[%s2 + $0x8] sm:$0xff]
    %v228 = vld [vmem:[%s2 + $0x10] sm:$0xff]
    %v229 = vld [vmem:[%s2 + $0x18] sm:$0xff]
    %v230 = vlaneseq
    %v231 = vshrl.u32 %v230, 7
    %v232 = vsub.s32 2, %v231
    %v233 = vrot.slane %v45, %v232
    %v235 = vsel %vm81, %v198, 0
    %v238 = vsel %vm81, %v203, 0
    %240 = vmatprep.subr.mxu0 0.0
    %241 = vmatpush1.msra.mxu0 %v226
    %242 = vmatprep.subr.mxu0 0.0
    %243 = vmatpush1.msra.mxu0 %v227
    %244 = vmatprep.subr.mxu0 0.0
    %245 = vmatpush1.msra.mxu0 %v228
    %246 = vmatprep.subr.mxu0 0.0
    %247 = vmatpush1.msra.mxu0 %v229
    %248 = vmatprep.subr.mxu0 0.0
    %249 = vmatpush1.msra.mxu0 0.0
    %250 = vmatprep.subr.mxu0 0.0
    %251 = vmatpush1.msra.mxu0 0.0
    %252 = vmatprep.subr.mxu0 0.0
    %253 = vmatpush1.msra.mxu0 0.0
    %254 = vmatprep.subr.mxu0 0.0
    %255 = vmatpush1.msra.mxu0 0.0
    %256 = vmatprep.subr.mxu0 0.0
    %257 = vmatpush1.msra.mxu0 0.0
    %258 = vmatprep.subr.mxu0 0.0
    %259 = vmatpush1.msra.mxu0 0.0
    %260 = vmatprep.subr.mxu0 0.0
    %261 = vmatpush1.msra.mxu0 0.0
    %262 = vmatprep.subr.mxu0 0.0
    %263 = vmatpush1.msra.mxu0 0.0
    %264 = vmatprep.subr.mxu0 0.0
    %265 = vmatpush1.msra.mxu0 0.0
    %266 = vmatprep.subr.mxu0 0.0
    %267 = vmatpush1.msra.mxu0 0.0
    %268 = vmatprep.subr.mxu0 0.0
    %269 = vmatpush1.msra.mxu0 0.0
    %270 = vmatprep.subr.mxu0 0.0
    %271 = vmatpush1.msra.mxu0 0.0
    %272 = vmatprep.subr.mxu0 0.0
    %273 = vmatpush1.msra.mxu0 0.0
    %274 = vmatprep.subr.mxu0 0.0
    %275 = vmatpush1.msra.mxu0 0.0
    %276 = vmatprep.subr.mxu0 0.0
    %277 = vmatpush1.msra.mxu0 0.0
    %278 = vmatprep.subr.mxu0 0.0
    %279 = vmatpush1.msra.mxu0 0.0
    %280 = vmatprep.subr.mxu0 0.0
    %281 = vmatpush1.msra.mxu0 0.0
    %282 = vmatprep.subr.mxu0 0.0
    %283 = vmatpush1.msra.mxu0 0.0
    %284 = vmatprep.subr.mxu0 0.0
    %285 = vmatpush1.msra.mxu0 0.0
    %286 = vmatprep.subr.mxu0 0.0
    %287 = vmatpush1.msra.mxu0 0.0
    %288 = vmatprep.subr.mxu0 0.0
    %289 = vmatpush1.msra.mxu0 0.0
    %290 = vmatprep.subr.mxu0 0.0
    %291 = vmatpush1.msra.mxu0 0.0
    %292 = vmatprep.subr.mxu0 0.0
    %293 = vmatpush1.msra.mxu0 0.0
    %294 = vmatprep.subr.mxu0 0.0
    %295 = vmatpush1.msra.mxu0 0.0
    %296 = vmatprep.subr.mxu0 0.0
    %297 = vmatpush1.msra.mxu0 0.0
    %298 = vmatprep.subr.mxu0 0.0
    %299 = vmatpush1.msra.mxu0 0.0
    %300 = vmatprep.subr.mxu0 0.0
    %301 = vmatpush1.msra.mxu0 0.0
    %302 = vmatprep.subr.mxu0 0.0
    %303 = vmatpush1.msra.mxu0 0.0
    %304 = vmatprep.mubr.f32.mxu0 0.0
    %305 = vmatmul.mubr.f32.gmra.mrb[0].mxu0 %v235
    %v306 = vpop.f32.mrb[0].mxu0
    %v307 = vadd.f32 %v233, %v306
    %v308 = vpop.f32.mrb[0].mxu0
    %309 = vmatprep.mubr.f32.mxu0 0.0
    %310 = vmatmul.mubr.f32.gmra.mrb[0].mxu0 %v238
    %v311 = vpop.f32.mrb[0].mxu0
    %v312 = vadd.f32 %v233, %v311
    %v313 = vpop.f32.mrb[0].mxu0
    %314 = vdwg.mxu0
    %s315 = scalar_lea.vmem %s2, 32
    %v316 = vld [vmem:[%s315] sm:$0xff]
    %v317 = vld [vmem:[%s315 + $0x8] sm:$0xff]
    %v318 = vld [vmem:[%s315 + $0x10] sm:$0xff]
    %v319 = vld [vmem:[%s315 + $0x18] sm:$0xff]
    %v320 = vlaneseq
    %v321 = vshrl.u32 %v320, 7
    %v322 = vsub.s32 3, %v321
    %v323 = vrot.slane %v45, %v322
    %v325 = vsel %vm81, %v208, 0
    %v328 = vsel %vm81, %v213, 0
    %330 = vmatprep.subr.mxu0 0.0
    %331 = vmatpush1.msra.mxu0 %v316
    %332 = vmatprep.subr.mxu0 0.0
    %333 = vmatpush1.msra.mxu0 %v317
    %334 = vmatprep.subr.mxu0 0.0
    %335 = vmatpush1.msra.mxu0 %v318
    %336 = vmatprep.subr.mxu0 0.0
    %337 = vmatpush1.msra.mxu0 %v319
    %338 = vmatprep.subr.mxu0 0.0
    %339 = vmatpush1.msra.mxu0 0.0
    %340 = vmatprep.subr.mxu0 0.0
    %341 = vmatpush1.msra.mxu0 0.0
    %342 = vmatprep.subr.mxu0 0.0
    %343 = vmatpush1.msra.mxu0 0.0
    %344 = vmatprep.subr.mxu0 0.0
    %345 = vmatpush1.msra.mxu0 0.0
    %346 = vmatprep.subr.mxu0 0.0
    %347 = vmatpush1.msra.mxu0 0.0
    %348 = vmatprep.subr.mxu0 0.0
    %349 = vmatpush1.msra.mxu0 0.0
    %350 = vmatprep.subr.mxu0 0.0
    %351 = vmatpush1.msra.mxu0 0.0
    %352 = vmatprep.subr.mxu0 0.0
    %353 = vmatpush1.msra.mxu0 0.0
    %354 = vmatprep.subr.mxu0 0.0
    %355 = vmatpush1.msra.mxu0 0.0
    %356 = vmatprep.subr.mxu0 0.0
    %357 = vmatpush1.msra.mxu0 0.0
    %358 = vmatprep.subr.mxu0 0.0
    %359 = vmatpush1.msra.mxu0 0.0
    %360 = vmatprep.subr.mxu0 0.0
    %361 = vmatpush1.msra.mxu0 0.0
    %362 = vmatprep.subr.mxu0 0.0
    %363 = vmatpush1.msra.mxu0 0.0
    %364 = vmatprep.subr.mxu0 0.0
    %365 = vmatpush1.msra.mxu0 0.0
    %366 = vmatprep.subr.mxu0 0.0
    %367 = vmatpush1.msra.mxu0 0.0
    %368 = vmatprep.subr.mxu0 0.0
    %369 = vmatpush1.msra.mxu0 0.0
    %370 = vmatprep.subr.mxu0 0.0
    %371 = vmatpush1.msra.mxu0 0.0
    %372 = vmatprep.subr.mxu0 0.0
    %373 = vmatpush1.msra.mxu0 0.0
    %374 = vmatprep.subr.mxu0 0.0
    %375 = vmatpush1.msra.mxu0 0.0
    %376 = vmatprep.subr.mxu0 0.0
    %377 = vmatpush1.msra.mxu0 0.0
    %378 = vmatprep.subr.mxu0 0.0
    %379 = vmatpush1.msra.mxu0 0.0
    %380 = vmatprep.subr.mxu0 0.0
    %381 = vmatpush1.msra.mxu0 0.0
    %382 = vmatprep.subr.mxu0 0.0
    %383 = vmatpush1.msra.mxu0 0.0
    %384 = vmatprep.subr.mxu0 0.0
    %385 = vmatpush1.msra.mxu0 0.0
    %386 = vmatprep.subr.mxu0 0.0
    %387 = vmatpush1.msra.mxu0 0.0
    %388 = vmatprep.subr.mxu0 0.0
    %389 = vmatpush1.msra.mxu0 0.0
    %390 = vmatprep.subr.mxu0 0.0
    %391 = vmatpush1.msra.mxu0 0.0
    %392 = vmatprep.subr.mxu0 0.0
    %393 = vmatpush1.msra.mxu0 0.0
    %394 = vmatprep.mubr.f32.mxu0 0.0
    %395 = vmatmul.mubr.f32.gmra.mrb[0].mxu0 %v325
    %v396 = vpop.f32.mrb[0].mxu0
    %v397 = vadd.f32 %v323, %v396
    %v398 = vpop.f32.mrb[0].mxu0
    %399 = vmatprep.mubr.f32.mxu0 0.0
    %400 = vmatmul.mubr.f32.gmra.mrb[0].mxu0 %v328
    %v401 = vpop.f32.mrb[0].mxu0
    %v402 = vadd.f32 %v323, %v401
    %v403 = vpop.f32.mrb[0].mxu0
    %404 = vdwg.mxu0
    %s405 = scalar_lea.vmem %s2, 64
    %v406 = vld [vmem:[%s405] sm:$0xff]
    %v407 = vld [vmem:[%s405 + $0x8] sm:$0xff]
    %v408 = vld [vmem:[%s405 + $0x10] sm:$0xff]
    %v409 = vld [vmem:[%s405 + $0x18] sm:$0xff]
    %v410 = vlaneseq
    %v411 = vshrl.u32 %v410, 7
    %v412 = vsub.s32 4, %v411
    %v413 = vrot.slane %v45, %v412
    %v415 = vsel %vm81, %v218, 0
    %v418 = vsel %vm81, %v223, 0
    %420 = vmatprep.subr.mxu0 0.0
    %421 = vmatpush1.msra.mxu0 %v406
    %422 = vmatprep.subr.mxu0 0.0
    %423 = vmatpush1.msra.mxu0 %v407
    %424 = vmatprep.subr.mxu0 0.0
    %425 = vmatpush1.msra.mxu0 %v408
    %426 = vmatprep.subr.mxu0 0.0
    %427 = vmatpush1.msra.mxu0 %v409
    %428 = vmatprep.subr.mxu0 0.0
    %429 = vmatpush1.msra.mxu0 0.0
    %430 = vmatprep.subr.mxu0 0.0
    %431 = vmatpush1.msra.mxu0 0.0
    %432 = vmatprep.subr.mxu0 0.0
    %433 = vmatpush1.msra.mxu0 0.0
    %434 = vmatprep.subr.mxu0 0.0
    %435 = vmatpush1.msra.mxu0 0.0
    %436 = vmatprep.subr.mxu0 0.0
    %437 = vmatpush1.msra.mxu0 0.0
    %438 = vmatprep.subr.mxu0 0.0
    %439 = vmatpush1.msra.mxu0 0.0
    %440 = vmatprep.subr.mxu0 0.0
    %441 = vmatpush1.msra.mxu0 0.0
    %442 = vmatprep.subr.mxu0 0.0
    %443 = vmatpush1.msra.mxu0 0.0
    %444 = vmatprep.subr.mxu0 0.0
    %445 = vmatpush1.msra.mxu0 0.0
    %446 = vmatprep.subr.mxu0 0.0
    %447 = vmatpush1.msra.mxu0 0.0
    %448 = vmatprep.subr.mxu0 0.0
    %449 = vmatpush1.msra.mxu0 0.0
    %450 = vmatprep.subr.mxu0 0.0
    %451 = vmatpush1.msra.mxu0 0.0
    %452 = vmatprep.subr.mxu0 0.0
    %453 = vmatpush1.msra.mxu0 0.0
    %454 = vmatprep.subr.mxu0 0.0
    %455 = vmatpush1.msra.mxu0 0.0
    %456 = vmatprep.subr.mxu0 0.0
    %457 = vmatpush1.msra.mxu0 0.0
    %458 = vmatprep.subr.mxu0 0.0
    %459 = vmatpush1.msra.mxu0 0.0
    %460 = vmatprep.subr.mxu0 0.0
    %461 = vmatpush1.msra.mxu0 0.0
    %462 = vmatprep.subr.mxu0 0.0
    %463 = vmatpush1.msra.mxu0 0.0
    %464 = vmatprep.subr.mxu0 0.0
    %465 = vmatpush1.msra.mxu0 0.0
    %466 = vmatprep.subr.mxu0 0.0
    %467 = vmatpush1.msra.mxu0 0.0
    %468 = vmatprep.subr.mxu0 0.0
    %469 = vmatpush1.msra.mxu0 0.0
    %470 = vmatprep.subr.mxu0 0.0
    %471 = vmatpush1.msra.mxu0 0.0
    %472 = vmatprep.subr.mxu0 0.0
    %473 = vmatpush1.msra.mxu0 0.0
    %474 = vmatprep.subr.mxu0 0.0
    %475 = vmatpush1.msra.mxu0 0.0
    %476 = vmatprep.subr.mxu0 0.0
    %477 = vmatpush1.msra.mxu0 0.0
    %478 = vmatprep.subr.mxu0 0.0
    %479 = vmatpush1.msra.mxu0 0.0
    %480 = vmatprep.subr.mxu0 0.0
    %481 = vmatpush1.msra.mxu0 0.0
    %482 = vmatprep.subr.mxu0 0.0
    %483 = vmatpush1.msra.mxu0 0.0
    %484 = vmatprep.mubr.f32.mxu0 0.0
    %485 = vmatmul.mubr.f32.gmra.mrb[0].mxu0 %v415
    %v486 = vpop.f32.mrb[0].mxu0
    %v487 = vadd.f32 %v413, %v486
    %v488 = vpop.f32.mrb[0].mxu0
    %489 = vmatprep.mubr.f32.mxu0 0.0
    %490 = vmatmul.mubr.f32.gmra.mrb[0].mxu0 %v418
    %v491 = vpop.f32.mrb[0].mxu0
    %v492 = vadd.f32 %v413, %v491
    %v493 = vpop.f32.mrb[0].mxu0
    %494 = vdwg.mxu0
    %v495 = vmul.f32 %v307, %v46
    %v496 = vmul.f32 %v312, %v47
    %v497 = vmul.f32 %v307, %v48
    %v498 = vmul.f32 %v312, %v49
    %v499 = vmul.f32 %v307, %v50
    %v500 = vmul.f32 %v312, %v51
    %v501 = vmul.f32 %v307, %v52
    %v502 = vmul.f32 %v312, %v53
    %v503 = vmul.f32 %v307, %v54
    %v504 = vmul.f32 %v312, %v55
    %v505 = vmul.f32 %v307, %v56
    %v506 = vmul.f32 %v312, %v57
    %v507 = vmul.f32 %v307, %v58
    %v508 = vmul.f32 %v312, %v59
    %v509 = vmul.f32 %v307, %v60
    %v510 = vmul.f32 %v312, %v61
    %527 = vrot.lane.b32.xlu0 %v46, 96
    %v528 = vpop.permute.xlu0 %527
    %529 = vrot.lane.b32.xlu0 %v47, 96
    %v530 = vpop.permute.xlu0 %529
    %531 = vrot.lane.b32.xlu0 %v48, 96
    %v532 = vpop.permute.xlu0 %531
    %533 = vrot.lane.b32.xlu0 %v49, 96
    %v534 = vpop.permute.xlu0 %533
    %535 = vrot.lane.b32.xlu0 %v50, 96
    %v536 = vpop.permute.xlu0 %535
    %537 = vrot.lane.b32.xlu0 %v51, 96
    %v538 = vpop.permute.xlu0 %537
    %539 = vrot.lane.b32.xlu0 %v52, 96
    %v540 = vpop.permute.xlu0 %539
    %541 = vrot.lane.b32.xlu0 %v53, 96
    %v542 = vpop.permute.xlu0 %541
    %543 = vrot.lane.b32.xlu0 %v54, 96
    %v544 = vpop.permute.xlu0 %543
    %545 = vrot.lane.b32.xlu0 %v55, 96
    %v546 = vpop.permute.xlu0 %545
    %547 = vrot.lane.b32.xlu0 %v56, 96
    %v548 = vpop.permute.xlu0 %547
    %549 = vrot.lane.b32.xlu0 %v57, 96
    %v550 = vpop.permute.xlu0 %549
    %551 = vrot.lane.b32.xlu0 %v58, 96
    %v552 = vpop.permute.xlu0 %551
    %553 = vrot.lane.b32.xlu0 %v59, 96
    %v554 = vpop.permute.xlu0 %553
    %555 = vrot.lane.b32.xlu0 %v60, 96
    %v556 = vpop.permute.xlu0 %555
    %557 = vrot.lane.b32.xlu0 %v61, 96
    %v558 = vpop.permute.xlu0 %557
    %v576 = vsel %vm81, %v495, 0
    %v579 = vsel %vm81, %v496, 0
    %v582 = vsel %vm81, %v497, 0
    %v585 = vsel %vm81, %v498, 0
    %v588 = vsel %vm81, %v499, 0
    %v591 = vsel %vm81, %v500, 0
    %v594 = vsel %vm81, %v501, 0
    %v597 = vsel %vm81, %v502, 0
    %v600 = vsel %vm81, %v503, 0
    %v603 = vsel %vm81, %v504, 0
    %v606 = vsel %vm81, %v505, 0
    %v609 = vsel %vm81, %v506, 0
    %v612 = vsel %vm81, %v507, 0
    %v615 = vsel %vm81, %v508, 0
    %v618 = vsel %vm81, %v509, 0
    %v621 = vsel %vm81, %v510, 0
    %v624 = vsel %vm81, %v397, 0
    %v627 = vsel %vm81, %v402, 0
    %629 = vmatprep.subr.mxu0 0.0
    %630 = vmatpush1.xpose.msra.mxu0 %v624
    %631 = vmatprep.subr.mxu0 0.0
    %632 = vmatpush1.xpose.msra.mxu0 %v627
    %633 = vmatprep.subr.mxu0 0.0
    %634 = vmatpush1.xpose.msra.mxu0 0.0
    %635 = vmatprep.subr.mxu0 0.0
    %636 = vmatpush1.xpose.msra.mxu0 0.0
    %637 = vmatprep.subr.mxu0 0.0
    %638 = vmatpush1.xpose.msra.mxu0 0.0
    %639 = vmatprep.subr.mxu0 0.0
    %640 = vmatpush1.xpose.msra.mxu0 0.0
    %641 = vmatprep.subr.mxu0 0.0
    %642 = vmatpush1.xpose.msra.mxu0 0.0
    %643 = vmatprep.subr.mxu0 0.0
    %644 = vmatpush1.xpose.msra.mxu0 0.0
    %645 = vmatprep.subr.mxu0 0.0
    %646 = vmatpush1.xpose.msra.mxu0 0.0
    %647 = vmatprep.subr.mxu0 0.0
    %648 = vmatpush1.xpose.msra.mxu0 0.0
    %649 = vmatprep.subr.mxu0 0.0
    %650 = vmatpush1.xpose.msra.mxu0 0.0
    %651 = vmatprep.subr.mxu0 0.0
    %652 = vmatpush1.xpose.msra.mxu0 0.0
    %653 = vmatprep.subr.mxu0 0.0
    %654 = vmatpush1.xpose.msra.mxu0 0.0
    %655 = vmatprep.subr.mxu0 0.0
    %656 = vmatpush1.xpose.msra.mxu0 0.0
    %657 = vmatprep.subr.mxu0 0.0
    %658 = vmatpush1.xpose.msra.mxu0 0.0
    %659 = vmatprep.subr.mxu0 0.0
    %660 = vmatpush1.xpose.msra.mxu0 0.0
    %661 = vmatprep.subr.mxu0 0.0
    %662 = vmatpush1.xpose.msra.mxu0 0.0
    %663 = vmatprep.subr.mxu0 0.0
    %664 = vmatpush1.xpose.msra.mxu0 0.0
    %665 = vmatprep.subr.mxu0 0.0
    %666 = vmatpush1.xpose.msra.mxu0 0.0
    %667 = vmatprep.subr.mxu0 0.0
    %668 = vmatpush1.xpose.msra.mxu0 0.0
    %669 = vmatprep.subr.mxu0 0.0
    %670 = vmatpush1.xpose.msra.mxu0 0.0
    %671 = vmatprep.subr.mxu0 0.0
    %672 = vmatpush1.xpose.msra.mxu0 0.0
    %673 = vmatprep.subr.mxu0 0.0
    %674 = vmatpush1.xpose.msra.mxu0 0.0
    %675 = vmatprep.subr.mxu0 0.0
    %676 = vmatpush1.xpose.msra.mxu0 0.0
    %677 = vmatprep.subr.mxu0 0.0
    %678 = vmatpush1.xpose.msra.mxu0 0.0
    %679 = vmatprep.subr.mxu0 0.0
    %680 = vmatpush1.xpose.msra.mxu0 0.0
    %681 = vmatprep.subr.mxu0 0.0
    %682 = vmatpush1.xpose.msra.mxu0 0.0
    %683 = vmatprep.subr.mxu0 0.0
    %684 = vmatpush1.xpose.msra.mxu0 0.0
    %685 = vmatprep.subr.mxu0 0.0
    %686 = vmatpush1.xpose.msra.mxu0 0.0
    %687 = vmatprep.subr.mxu0 0.0
    %688 = vmatpush1.xpose.msra.mxu0 0.0
    %689 = vmatprep.subr.mxu0 0.0
    %690 = vmatpush1.xpose.msra.mxu0 0.0
    %691 = vmatprep.subr.mxu0 0.0
    %692 = vmatpush1.xpose.msra.mxu0 0.0
    %693 = vmatprep.mubr.f32.mxu0 0.0
    %694 = vmatmul.mubr.f32.gmra.mrb[0].mxu0 %v576
    %v695 = vpop.f32.mrb[0].mxu0
    %v696 = vadd.f32 %v528, %v695
    %v697 = vpop.f32.mrb[0].mxu0
    %698 = vmatprep.mubr.f32.mxu0 0.0
    %699 = vmatmul.mubr.f32.gmra.mrb[0].mxu0 %v579
    %v700 = vpop.f32.mrb[0].mxu0
    %v701 = vadd.f32 %v530, %v700
    %v702 = vpop.f32.mrb[0].mxu0
    %703 = vmatprep.mubr.f32.mxu0 0.0
    %704 = vmatmul.mubr.f32.gmra.mrb[0].mxu0 %v582
    %v705 = vpop.f32.mrb[0].mxu0
    %v706 = vadd.f32 %v532, %v705
    %v707 = vpop.f32.mrb[0].mxu0
    %708 = vmatprep.mubr.f32.mxu0 0.0
    %709 = vmatmul.mubr.f32.gmra.mrb[0].mxu0 %v585
    %v710 = vpop.f32.mrb[0].mxu0
    %v711 = vadd.f32 %v534, %v710
    %v712 = vpop.f32.mrb[0].mxu0
    %713 = vmatprep.mubr.f32.mxu0 0.0
    %714 = vmatmul.mubr.f32.gmra.mrb[0].mxu0 %v588
    %v715 = vpop.f32.mrb[0].mxu0
    %v716 = vadd.f32 %v536, %v715
    %v717 = vpop.f32.mrb[0].mxu0
    %718 = vmatprep.mubr.f32.mxu0 0.0
    %719 = vmatmul.mubr.f32.gmra.mrb[0].mxu0 %v591
    %v720 = vpop.f32.mrb[0].mxu0
    %v721 = vadd.f32 %v538, %v720
    %v722 = vpop.f32.mrb[0].mxu0
    %723 = vmatprep.mubr.f32.mxu0 0.0
    %724 = vmatmul.mubr.f32.gmra.mrb[0].mxu0 %v594
    %v725 = vpop.f32.mrb[0].mxu0
    %v726 = vadd.f32 %v540, %v725
    %v727 = vpop.f32.mrb[0].mxu0
    %728 = vmatprep.mubr.f32.mxu0 0.0
    %729 = vmatmul.mubr.f32.gmra.mrb[0].mxu0 %v597
    %v730 = vpop.f32.mrb[0].mxu0
    %v731 = vadd.f32 %v542, %v730
    %v732 = vpop.f32.mrb[0].mxu0
    %733 = vmatprep.mubr.f32.mxu0 0.0
    %734 = vmatmul.mubr.f32.gmra.mrb[0].mxu0 %v600
    %v735 = vpop.f32.mrb[0].mxu0
    %v736 = vadd.f32 %v544, %v735
    %v737 = vpop.f32.mrb[0].mxu0
    %738 = vmatprep.mubr.f32.mxu0 0.0
    %739 = vmatmul.mubr.f32.gmra.mrb[0].mxu0 %v603
    %v740 = vpop.f32.mrb[0].mxu0
    %v741 = vadd.f32 %v546, %v740
    %v742 = vpop.f32.mrb[0].mxu0
    %743 = vmatprep.mubr.f32.mxu0 0.0
    %744 = vmatmul.mubr.f32.gmra.mrb[0].mxu0 %v606
    %v745 = vpop.f32.mrb[0].mxu0
    %v746 = vadd.f32 %v548, %v745
    %v747 = vpop.f32.mrb[0].mxu0
    %748 = vmatprep.mubr.f32.mxu0 0.0
    %749 = vmatmul.mubr.f32.gmra.mrb[0].mxu0 %v609
    %v750 = vpop.f32.mrb[0].mxu0
    %v751 = vadd.f32 %v550, %v750
    %v752 = vpop.f32.mrb[0].mxu0
    %753 = vmatprep.mubr.f32.mxu0 0.0
    %754 = vmatmul.mubr.f32.gmra.mrb[0].mxu0 %v612
    %v755 = vpop.f32.mrb[0].mxu0
    %v756 = vadd.f32 %v552, %v755
    %v757 = vpop.f32.mrb[0].mxu0
    %758 = vmatprep.mubr.f32.mxu0 0.0
    %759 = vmatmul.mubr.f32.gmra.mrb[0].mxu0 %v615
    %v760 = vpop.f32.mrb[0].mxu0
    %v761 = vadd.f32 %v554, %v760
    %v762 = vpop.f32.mrb[0].mxu0
    %763 = vmatprep.mubr.f32.mxu0 0.0
    %764 = vmatmul.mubr.f32.gmra.mrb[0].mxu0 %v618
    %v765 = vpop.f32.mrb[0].mxu0
    %v766 = vadd.f32 %v556, %v765
    %v767 = vpop.f32.mrb[0].mxu0
    %768 = vmatprep.mubr.f32.mxu0 0.0
    %769 = vmatmul.mubr.f32.gmra.mrb[0].mxu0 %v621
    %v770 = vpop.f32.mrb[0].mxu0
    %v771 = vadd.f32 %v558, %v770
    %v772 = vpop.f32.mrb[0].mxu0
    %773 = vdwg.mxu0
    %vm774 = vcmask 130048
    %v775 = vsel %vm774, %v696, -inf
    %776 = vmax.xlane.f32.xlu0 %v775
    %v777 = vpop.xlane.xlu0 %776
    %v778 = vsel %vm774, %v701, -inf
    %779 = vmax.xlane.f32.xlu0 %v778
    %v780 = vpop.xlane.xlu0 %779
    %v781 = vsel %vm774, %v706, -inf
    %782 = vmax.xlane.f32.xlu0 %v781
    %v783 = vpop.xlane.xlu0 %782
    %v784 = vsel %vm774, %v711, -inf
    %785 = vmax.xlane.f32.xlu0 %v784
    %v786 = vpop.xlane.xlu0 %785
    %v787 = vsel %vm774, %v716, -inf
    %788 = vmax.xlane.f32.xlu0 %v787
    %v789 = vpop.xlane.xlu0 %788
    %v790 = vsel %vm774, %v721, -inf
    %791 = vmax.xlane.f32.xlu0 %v790
    %v792 = vpop.xlane.xlu0 %791
    %v793 = vsel %vm774, %v726, -inf
    %794 = vmax.xlane.f32.xlu0 %v793
    %v795 = vpop.xlane.xlu0 %794
    %v796 = vsel %vm774, %v731, -inf
    %797 = vmax.xlane.f32.xlu0 %v796
    %v798 = vpop.xlane.xlu0 %797
    %v799 = vsel %vm774, %v736, -inf
    %800 = vmax.xlane.f32.xlu0 %v799
    %v801 = vpop.xlane.xlu0 %800
    %v802 = vsel %vm774, %v741, -inf
    %803 = vmax.xlane.f32.xlu0 %v802
    %v804 = vpop.xlane.xlu0 %803
    %v805 = vsel %vm774, %v746, -inf
    %806 = vmax.xlane.f32.xlu0 %v805
    %v807 = vpop.xlane.xlu0 %806
    %v808 = vsel %vm774, %v751, -inf
    %809 = vmax.xlane.f32.xlu0 %v808
    %v810 = vpop.xlane.xlu0 %809
    %v811 = vsel %vm774, %v756, -inf
    %812 = vmax.xlane.f32.xlu0 %v811
    %v813 = vpop.xlane.xlu0 %812
    %v814 = vsel %vm774, %v761, -inf
    %815 = vmax.xlane.f32.xlu0 %v814
    %v816 = vpop.xlane.xlu0 %815
    %v817 = vsel %vm774, %v766, -inf
    %818 = vmax.xlane.f32.xlu0 %v817
    %v819 = vpop.xlane.xlu0 %818
    %v820 = vsel %vm774, %v771, -inf
    %821 = vmax.xlane.f32.xlu0 %v820
    %v822 = vpop.xlane.xlu0 %821
    %v823 = vsub.f32 %v696, %v777
    %v824 = vsub.f32 %v701, %v780
    %v825 = vsub.f32 %v706, %v783
    %v826 = vsub.f32 %v711, %v786
    %v827 = vsub.f32 %v716, %v789
    %v828 = vsub.f32 %v721, %v792
    %v829 = vsub.f32 %v726, %v795
    %v830 = vsub.f32 %v731, %v798
    %v831 = vsub.f32 %v736, %v801
    %v832 = vsub.f32 %v741, %v804
    %v833 = vsub.f32 %v746, %v807
    %v834 = vsub.f32 %v751, %v810
    %v835 = vsub.f32 %v756, %v813
    %v836 = vsub.f32 %v761, %v816
    %v837 = vsub.f32 %v766, %v819
    %v838 = vsub.f32 %v771, %v822
    %v839 = vmul.f32 %v823, 1.442695
    %v840 = vpow.pop %v839
    %v841 = vmul.f32 %v824, 1.442695
    %v842 = vpow.pop %v841
    %v843 = vmul.f32 %v825, 1.442695
    %v844 = vpow.pop %v843
    %v845 = vmul.f32 %v826, 1.442695
    %v846 = vpow.pop %v845
    %v847 = vmul.f32 %v827, 1.442695
    %v848 = vpow.pop %v847
    %v849 = vmul.f32 %v828, 1.442695
    %v850 = vpow.pop %v849
    %v851 = vmul.f32 %v829, 1.442695
    %v852 = vpow.pop %v851
    %v853 = vmul.f32 %v830, 1.442695
    %v854 = vpow.pop %v853
    %v855 = vmul.f32 %v831, 1.442695
    %v856 = vpow.pop %v855
    %v857 = vmul.f32 %v832, 1.442695
    %v858 = vpow.pop %v857
    %v859 = vmul.f32 %v833, 1.442695
    %v860 = vpow.pop %v859
    %v861 = vmul.f32 %v834, 1.442695
    %v862 = vpow.pop %v861
    %v863 = vmul.f32 %v835, 1.442695
    %v864 = vpow.pop %v863
    %v865 = vmul.f32 %v836, 1.442695
    %v866 = vpow.pop %v865
    %v867 = vmul.f32 %v837, 1.442695
    %v868 = vpow.pop %v867
    %v869 = vmul.f32 %v838, 1.442695
    %v870 = vpow.pop %v869
    %v871 = vsel %vm774, %v840, 0.0
    %872 = vadd.xlane.f32.xlu0 %v871
    %v873 = vpop.xlane.xlu0 %872
    %v874 = vsel %vm774, %v842, 0.0
    %875 = vadd.xlane.f32.xlu0 %v874
    %v876 = vpop.xlane.xlu0 %875
    %v877 = vsel %vm774, %v844, 0.0
    %878 = vadd.xlane.f32.xlu0 %v877
    %v879 = vpop.xlane.xlu0 %878
    %v880 = vsel %vm774, %v846, 0.0
    %881 = vadd.xlane.f32.xlu0 %v880
    %v882 = vpop.xlane.xlu0 %881
    %v883 = vsel %vm774, %v848, 0.0
    %884 = vadd.xlane.f32.xlu0 %v883
    %v885 = vpop.xlane.xlu0 %884
    %v886 = vsel %vm774, %v850, 0.0
    %887 = vadd.xlane.f32.xlu0 %v886
    %v888 = vpop.xlane.xlu0 %887
    %v889 = vsel %vm774, %v852, 0.0
    %890 = vadd.xlane.f32.xlu0 %v889
    %v891 = vpop.xlane.xlu0 %890
    %v892 = vsel %vm774, %v854, 0.0
    %893 = vadd.xlane.f32.xlu0 %v892
    %v894 = vpop.xlane.xlu0 %893
    %v895 = vsel %vm774, %v856, 0.0
    %896 = vadd.xlane.f32.xlu0 %v895
    %v897 = vpop.xlane.xlu0 %896
    %v898 = vsel %vm774, %v858, 0.0
    %899 = vadd.xlane.f32.xlu0 %v898
    %v900 = vpop.xlane.xlu0 %899
    %v901 = vsel %vm774, %v860, 0.0
    %902 = vadd.xlane.f32.xlu0 %v901
    %v903 = vpop.xlane.xlu0 %902
    %v904 = vsel %vm774, %v862, 0.0
    %905 = vadd.xlane.f32.xlu0 %v904
    %v906 = vpop.xlane.xlu0 %905
    %v907 = vsel %vm774, %v864, 0.0
    %908 = vadd.xlane.f32.xlu0 %v907
    %v909 = vpop.xlane.xlu0 %908
    %v910 = vsel %vm774, %v866, 0.0
    %911 = vadd.xlane.f32.xlu0 %v910
    %v912 = vpop.xlane.xlu0 %911
    %v913 = vsel %vm774, %v868, 0.0
    %914 = vadd.xlane.f32.xlu0 %v913
    %v915 = vpop.xlane.xlu0 %914
    %v916 = vsel %vm774, %v870, 0.0
    %917 = vadd.xlane.f32.xlu0 %v916
    %v918 = vpop.xlane.xlu0 %917
    %v919 = vrcp.pop %v873
    %v920 = vrcp.pop %v876
    %v921 = vrcp.pop %v879
    %v922 = vrcp.pop %v882
    %v923 = vrcp.pop %v885
    %v924 = vrcp.pop %v888
    %v925 = vrcp.pop %v891
    %v926 = vrcp.pop %v894
    %v927 = vrcp.pop %v897
    %v928 = vrcp.pop %v900
    %v929 = vrcp.pop %v903
    %v930 = vrcp.pop %v906
    %v931 = vrcp.pop %v909
    %v932 = vrcp.pop %v912
    %v933 = vrcp.pop %v915
    %v934 = vrcp.pop %v918
    %v935 = vmul.f32 %v840, %v919
    %v936 = vmul.f32 %v842, %v920
    %v937 = vmul.f32 %v844, %v921
    %v938 = vmul.f32 %v846, %v922
    %v939 = vmul.f32 %v848, %v923
    %v940 = vmul.f32 %v850, %v924
    %v941 = vmul.f32 %v852, %v925
    %v942 = vmul.f32 %v854, %v926
    %v943 = vmul.f32 %v856, %v927
    %v944 = vmul.f32 %v858, %v928
    %v945 = vmul.f32 %v860, %v929
    %v946 = vmul.f32 %v862, %v930
    %v947 = vmul.f32 %v864, %v931
    %v948 = vmul.f32 %v866, %v932
    %v949 = vmul.f32 %v868, %v933
    %v950 = vmul.f32 %v870, %v934
    %v952 = vsel %vm774, %v935, 0
    %v955 = vsel %vm774, %v936, 0
    %v958 = vsel %vm774, %v937, 0
    %v961 = vsel %vm774, %v938, 0
    %v964 = vsel %vm774, %v939, 0
    %v967 = vsel %vm774, %v940, 0
    %v970 = vsel %vm774, %v941, 0
    %v973 = vsel %vm774, %v942, 0
    %v976 = vsel %vm774, %v943, 0
    %v979 = vsel %vm774, %v944, 0
    %v982 = vsel %vm774, %v945, 0
    %v985 = vsel %vm774, %v946, 0
    %v988 = vsel %vm774, %v947, 0
    %v991 = vsel %vm774, %v948, 0
    %v994 = vsel %vm774, %v949, 0
    %v997 = vsel %vm774, %v950, 0
    %999 = vmatprep.subr.mxu0 0.0
    %1000 = vmatpush1.msra.mxu0 %v487
    %1001 = vmatprep.subr.mxu0 0.0
    %1002 = vmatpush1.msra.mxu0 %v492
    %1003 = vmatprep.subr.mxu0 0.0
    %1004 = vmatpush1.msra.mxu0 0.0
    %1005 = vmatprep.subr.mxu0 0.0
    %1006 = vmatpush1.msra.mxu0 0.0
    %1007 = vmatprep.subr.mxu0 0.0
    %1008 = vmatpush1.msra.mxu0 0.0
    %1009 = vmatprep.subr.mxu0 0.0
    %1010 = vmatpush1.msra.mxu0 0.0
    %1011 = vmatprep.subr.mxu0 0.0
    %1012 = vmatpush1.msra.mxu0 0.0
    %1013 = vmatprep.subr.mxu0 0.0
    %1014 = vmatpush1.msra.mxu0 0.0
    %1015 = vmatprep.subr.mxu0 0.0
    %1016 = vmatpush1.msra.mxu0 0.0
    %1017 = vmatprep.subr.mxu0 0.0
    %1018 = vmatpush1.msra.mxu0 0.0
    %1019 = vmatprep.subr.mxu0 0.0
    %1020 = vmatpush1.msra.mxu0 0.0
    %1021 = vmatprep.subr.mxu0 0.0
    %1022 = vmatpush1.msra.mxu0 0.0
    %1023 = vmatprep.subr.mxu0 0.0
    %1024 = vmatpush1.msra.mxu0 0.0
    %1025 = vmatprep.subr.mxu0 0.0
    %1026 = vmatpush1.msra.mxu0 0.0
    %1027 = vmatprep.subr.mxu0 0.0
    %1028 = vmatpush1.msra.mxu0 0.0
    %1029 = vmatprep.subr.mxu0 0.0
    %1030 = vmatpush1.msra.mxu0 0.0
    %1031 = vmatprep.subr.mxu0 0.0
    %1032 = vmatpush1.msra.mxu0 0.0
    %1033 = vmatprep.subr.mxu0 0.0
    %1034 = vmatpush1.msra.mxu0 0.0
    %1035 = vmatprep.subr.mxu0 0.0
    %1036 = vmatpush1.msra.mxu0 0.0
    %1037 = vmatprep.subr.mxu0 0.0
    %1038 = vmatpush1.msra.mxu0 0.0
    %1039 = vmatprep.subr.mxu0 0.0
    %1040 = vmatpush1.msra.mxu0 0.0
    %1041 = vmatprep.subr.mxu0 0.0
    %1042 = vmatpush1.msra.mxu0 0.0
    %1043 = vmatprep.subr.mxu0 0.0
    %1044 = vmatpush1.msra.mxu0 0.0
    %1045 = vmatprep.subr.mxu0 0.0
    %1046 = vmatpush1.msra.mxu0 0.0
    %1047 = vmatprep.subr.mxu0 0.0
    %1048 = vmatpush1.msra.mxu0 0.0
    %1049 = vmatprep.subr.mxu0 0.0
    %1050 = vmatpush1.msra.mxu0 0.0
    %1051 = vmatprep.subr.mxu0 0.0
    %1052 = vmatpush1.msra.mxu0 0.0
    %1053 = vmatprep.subr.mxu0 0.0
    %1054 = vmatpush1.msra.mxu0 0.0
    %1055 = vmatprep.subr.mxu0 0.0
    %1056 = vmatpush1.msra.mxu0 0.0
    %1057 = vmatprep.subr.mxu0 0.0
    %1058 = vmatpush1.msra.mxu0 0.0
    %1059 = vmatprep.subr.mxu0 0.0
    %1060 = vmatpush1.msra.mxu0 0.0
    %1061 = vmatprep.subr.mxu0 0.0
    %1062 = vmatpush1.msra.mxu0 0.0
    %1063 = vmatprep.mubr.f32.mxu0 0.0
    %1064 = vmatmul.mubr.f32.gmra.mrb[0].mxu0 %v952
    %v1065 = vpop.f32.mrb[0].mxu0
    %v1066 = vadd.f32 0.0, %v1065
    %v1067 = vpop.f32.mrb[0].mxu0
    %1068 = vmatprep.mubr.f32.mxu0 0.0
    %1069 = vmatmul.mubr.f32.gmra.mrb[0].mxu0 %v955
    %v1070 = vpop.f32.mrb[0].mxu0
    %v1071 = vadd.f32 0.0, %v1070
    %v1072 = vpop.f32.mrb[0].mxu0
    %1073 = vmatprep.mubr.f32.mxu0 0.0
    %1074 = vmatmul.mubr.f32.gmra.mrb[0].mxu0 %v958
    %v1075 = vpop.f32.mrb[0].mxu0
    %v1076 = vadd.f32 0.0, %v1075
    %v1077 = vpop.f32.mrb[0].mxu0
    %1078 = vmatprep.mubr.f32.mxu0 0.0
    %1079 = vmatmul.mubr.f32.gmra.mrb[0].mxu0 %v961
    %v1080 = vpop.f32.mrb[0].mxu0
    %v1081 = vadd.f32 0.0, %v1080
    %v1082 = vpop.f32.mrb[0].mxu0
    %1083 = vmatprep.mubr.f32.mxu0 0.0
    %1084 = vmatmul.mubr.f32.gmra.mrb[0].mxu0 %v964
    %v1085 = vpop.f32.mrb[0].mxu0
    %v1086 = vadd.f32 0.0, %v1085
    %v1087 = vpop.f32.mrb[0].mxu0
    %1088 = vmatprep.mubr.f32.mxu0 0.0
    %1089 = vmatmul.mubr.f32.gmra.mrb[0].mxu0 %v967
    %v1090 = vpop.f32.mrb[0].mxu0
    %v1091 = vadd.f32 0.0, %v1090
    %v1092 = vpop.f32.mrb[0].mxu0
    %1093 = vmatprep.mubr.f32.mxu0 0.0
    %1094 = vmatmul.mubr.f32.gmra.mrb[0].mxu0 %v970
    %v1095 = vpop.f32.mrb[0].mxu0
    %v1096 = vadd.f32 0.0, %v1095
    %v1097 = vpop.f32.mrb[0].mxu0
    %1098 = vmatprep.mubr.f32.mxu0 0.0
    %1099 = vmatmul.mubr.f32.gmra.mrb[0].mxu0 %v973
    %v1100 = vpop.f32.mrb[0].mxu0
    %v1101 = vadd.f32 0.0, %v1100
    %v1102 = vpop.f32.mrb[0].mxu0
    %1103 = vmatprep.mubr.f32.mxu0 0.0
    %1104 = vmatmul.mubr.f32.gmra.mrb[0].mxu0 %v976
    %v1105 = vpop.f32.mrb[0].mxu0
    %v1106 = vadd.f32 0.0, %v1105
    %v1107 = vpop.f32.mrb[0].mxu0
    %1108 = vmatprep.mubr.f32.mxu0 0.0
    %1109 = vmatmul.mubr.f32.gmra.mrb[0].mxu0 %v979
    %v1110 = vpop.f32.mrb[0].mxu0
    %v1111 = vadd.f32 0.0, %v1110
    %v1112 = vpop.f32.mrb[0].mxu0
    %1113 = vmatprep.mubr.f32.mxu0 0.0
    %1114 = vmatmul.mubr.f32.gmra.mrb[0].mxu0 %v982
    %v1115 = vpop.f32.mrb[0].mxu0
    %v1116 = vadd.f32 0.0, %v1115
    %v1117 = vpop.f32.mrb[0].mxu0
    %1118 = vmatprep.mubr.f32.mxu0 0.0
    %1119 = vmatmul.mubr.f32.gmra.mrb[0].mxu0 %v985
    %v1120 = vpop.f32.mrb[0].mxu0
    %v1121 = vadd.f32 0.0, %v1120
    %v1122 = vpop.f32.mrb[0].mxu0
    %1123 = vmatprep.mubr.f32.mxu0 0.0
    %1124 = vmatmul.mubr.f32.gmra.mrb[0].mxu0 %v988
    %v1125 = vpop.f32.mrb[0].mxu0
    %v1126 = vadd.f32 0.0, %v1125
    %v1127 = vpop.f32.mrb[0].mxu0
    %1128 = vmatprep.mubr.f32.mxu0 0.0
    %1129 = vmatmul.mubr.f32.gmra.mrb[0].mxu0 %v991
    %v1130 = vpop.f32.mrb[0].mxu0
    %v1131 = vadd.f32 0.0, %v1130
    %v1132 = vpop.f32.mrb[0].mxu0
    %1133 = vmatprep.mubr.f32.mxu0 0.0
    %1134 = vmatmul.mubr.f32.gmra.mrb[0].mxu0 %v994
    %v1135 = vpop.f32.mrb[0].mxu0
    %v1136 = vadd.f32 0.0, %v1135
    %v1137 = vpop.f32.mrb[0].mxu0
    %1138 = vmatprep.mubr.f32.mxu0 0.0
    %1139 = vmatmul.mubr.f32.gmra.mrb[0].mxu0 %v997
    %v1140 = vpop.f32.mrb[0].mxu0
    %v1141 = vadd.f32 0.0, %v1140
    %v1142 = vpop.f32.mrb[0].mxu0
    %1143 = vdwg.mxu0
    %v1144 = vmul.f32 %v1066, %v46
    %v1145 = vmul.f32 %v1071, %v47
    %v1146 = vmul.f32 %v1076, %v48
    %v1147 = vmul.f32 %v1081, %v49
    %v1148 = vmul.f32 %v1086, %v50
    %v1149 = vmul.f32 %v1091, %v51
    %v1150 = vmul.f32 %v1096, %v52
    %v1151 = vmul.f32 %v1101, %v53
    %v1152 = vmul.f32 %v1106, %v54
    %v1153 = vmul.f32 %v1111, %v55
    %v1154 = vmul.f32 %v1116, %v56
    %v1155 = vmul.f32 %v1121, %v57
    %v1156 = vmul.f32 %v1126, %v58
    %v1157 = vmul.f32 %v1131, %v59
    %v1158 = vmul.f32 %v1136, %v60
    %v1159 = vmul.f32 %v1141, %v61
    %v1160 = vadd.f32 %v1144, %v1152
    %v1161 = vadd.f32 %v1145, %v1153
    %v1162 = vadd.f32 %v1146, %v1154
    %v1163 = vadd.f32 %v1147, %v1155
    %v1164 = vadd.f32 %v1148, %v1156
    %v1165 = vadd.f32 %v1149, %v1157
    %v1166 = vadd.f32 %v1150, %v1158
    %v1167 = vadd.f32 %v1151, %v1159
    %v1168 = vadd.f32 %v1160, %v1164
    %v1169 = vadd.f32 %v1161, %v1165
    %v1170 = vadd.f32 %v1162, %v1166
    %v1171 = vadd.f32 %v1163, %v1167
    %v1172 = vadd.f32 %v1168, %v1170
    %v1173 = vadd.f32 %v1169, %v1171
    %s1174 = scalar_lea.vmem %s2, 96
    %v1175 = vld [vmem:[%s1174] sm:$0xff]
    %v1176 = vld [vmem:[%s1174 + $0x8] sm:$0xff]
    %v1177 = vld [vmem:[%s1174 + $0x10] sm:$0xff]
    %v1178 = vld [vmem:[%s1174 + $0x18] sm:$0xff]
    %v1179 = vlaneseq
    %v1180 = vshrl.u32 %v1179, 7
    %v1181 = vsub.s32 5, %v1180
    %v1182 = vrot.slane %v45, %v1181
    %v1184 = vsel %vm81, %v1172, 0
    %v1187 = vsel %vm81, %v1173, 0
    %1189 = vmatprep.subr.mxu0 0.0
    %1190 = vmatpush1.msra.mxu0 %v1175
    %1191 = vmatprep.subr.mxu0 0.0
    %1192 = vmatpush1.msra.mxu0 %v1176
    %1193 = vmatprep.subr.mxu0 0.0
    %1194 = vmatpush1.msra.mxu0 %v1177
    %1195 = vmatprep.subr.mxu0 0.0
    %1196 = vmatpush1.msra.mxu0 %v1178
    %1197 = vmatprep.subr.mxu0 0.0
    %1198 = vmatpush1.msra.mxu0 0.0
    %1199 = vmatprep.subr.mxu0 0.0
    %1200 = vmatpush1.msra.mxu0 0.0
    %1201 = vmatprep.subr.mxu0 0.0
    %1202 = vmatpush1.msra.mxu0 0.0
    %1203 = vmatprep.subr.mxu0 0.0
    %1204 = vmatpush1.msra.mxu0 0.0
    %1205 = vmatprep.subr.mxu0 0.0
    %1206 = vmatpush1.msra.mxu0 0.0
    %1207 = vmatprep.subr.mxu0 0.0
    %1208 = vmatpush1.msra.mxu0 0.0
    %1209 = vmatprep.subr.mxu0 0.0
    %1210 = vmatpush1.msra.mxu0 0.0
    %1211 = vmatprep.subr.mxu0 0.0
    %1212 = vmatpush1.msra.mxu0 0.0
    %1213 = vmatprep.subr.mxu0 0.0
    %1214 = vmatpush1.msra.mxu0 0.0
    %1215 = vmatprep.subr.mxu0 0.0
    %1216 = vmatpush1.msra.mxu0 0.0
    %1217 = vmatprep.subr.mxu0 0.0
    %1218 = vmatpush1.msra.mxu0 0.0
    %1219 = vmatprep.subr.mxu0 0.0
    %1220 = vmatpush1.msra.mxu0 0.0
    %1221 = vmatprep.subr.mxu0 0.0
    %1222 = vmatpush1.msra.mxu0 0.0
    %1223 = vmatprep.subr.mxu0 0.0
    %1224 = vmatpush1.msra.mxu0 0.0
    %1225 = vmatprep.subr.mxu0 0.0
    %1226 = vmatpush1.msra.mxu0 0.0
    %1227 = vmatprep.subr.mxu0 0.0
    %1228 = vmatpush1.msra.mxu0 0.0
    %1229 = vmatprep.subr.mxu0 0.0
    %1230 = vmatpush1.msra.mxu0 0.0
    %1231 = vmatprep.subr.mxu0 0.0
    %1232 = vmatpush1.msra.mxu0 0.0
    %1233 = vmatprep.subr.mxu0 0.0
    %1234 = vmatpush1.msra.mxu0 0.0
    %1235 = vmatprep.subr.mxu0 0.0
    %1236 = vmatpush1.msra.mxu0 0.0
    %1237 = vmatprep.subr.mxu0 0.0
    %1238 = vmatpush1.msra.mxu0 0.0
    %1239 = vmatprep.subr.mxu0 0.0
    %1240 = vmatpush1.msra.mxu0 0.0
    %1241 = vmatprep.subr.mxu0 0.0
    %1242 = vmatpush1.msra.mxu0 0.0
    %1243 = vmatprep.subr.mxu0 0.0
    %1244 = vmatpush1.msra.mxu0 0.0
    %1245 = vmatprep.subr.mxu0 0.0
    %1246 = vmatpush1.msra.mxu0 0.0
    %1247 = vmatprep.subr.mxu0 0.0
    %1248 = vmatpush1.msra.mxu0 0.0
    %1249 = vmatprep.subr.mxu0 0.0
    %1250 = vmatpush1.msra.mxu0 0.0
    %1251 = vmatprep.subr.mxu0 0.0
    %1252 = vmatpush1.msra.mxu0 0.0
    %1253 = vmatprep.mubr.f32.mxu0 0.0
    %1254 = vmatmul.mubr.f32.gmra.mrb[0].mxu0 %v1184
    %v1255 = vpop.f32.mrb[0].mxu0
    %v1256 = vadd.f32 %v1182, %v1255
    %v1257 = vpop.f32.mrb[0].mxu0
    %1258 = vmatprep.mubr.f32.mxu0 0.0
    %1259 = vmatmul.mubr.f32.gmra.mrb[0].mxu0 %v1187
    %v1260 = vpop.f32.mrb[0].mxu0
    %v1261 = vadd.f32 %v1182, %v1260
    %v1262 = vpop.f32.mrb[0].mxu0
    %1263 = vdwg.mxu0
    %v1264 = vld [vmem:[%s5] sm:$0x3]
    %v1266 = vsel %vm774, %v1264, 0
    %1268 = vmatprep.subr.mxu0 0.0
    %1269 = vmatpush1.msra.mxu0 %v1256
    %1270 = vmatprep.subr.mxu0 0.0
    %1271 = vmatpush1.msra.mxu0 %v1261
    %1272 = vmatprep.subr.mxu0 0.0
    %1273 = vmatpush1.msra.mxu0 0.0
    %1274 = vmatprep.subr.mxu0 0.0
    %1275 = vmatpush1.msra.mxu0 0.0
    %1276 = vmatprep.subr.mxu0 0.0
    %1277 = vmatpush1.msra.mxu0 0.0
    %1278 = vmatprep.subr.mxu0 0.0
    %1279 = vmatpush1.msra.mxu0 0.0
    %1280 = vmatprep.subr.mxu0 0.0
    %1281 = vmatpush1.msra.mxu0 0.0
    %1282 = vmatprep.subr.mxu0 0.0
    %1283 = vmatpush1.msra.mxu0 0.0
    %1284 = vmatprep.subr.mxu0 0.0
    %1285 = vmatpush1.msra.mxu0 0.0
    %1286 = vmatprep.subr.mxu0 0.0
    %1287 = vmatpush1.msra.mxu0 0.0
    %1288 = vmatprep.subr.mxu0 0.0
    %1289 = vmatpush1.msra.mxu0 0.0
    %1290 = vmatprep.subr.mxu0 0.0
    %1291 = vmatpush1.msra.mxu0 0.0
    %1292 = vmatprep.subr.mxu0 0.0
    %1293 = vmatpush1.msra.mxu0 0.0
    %1294 = vmatprep.subr.mxu0 0.0
    %1295 = vmatpush1.msra.mxu0 0.0
    %1296 = vmatprep.subr.mxu0 0.0
    %1297 = vmatpush1.msra.mxu0 0.0
    %1298 = vmatprep.subr.mxu0 0.0
    %1299 = vmatpush1.msra.mxu0 0.0
    %1300 = vmatprep.subr.mxu0 0.0
    %1301 = vmatpush1.msra.mxu0 0.0
    %1302 = vmatprep.subr.mxu0 0.0
    %1303 = vmatpush1.msra.mxu0 0.0
    %1304 = vmatprep.subr.mxu0 0.0
    %1305 = vmatpush1.msra.mxu0 0.0
    %1306 = vmatprep.subr.mxu0 0.0
    %1307 = vmatpush1.msra.mxu0 0.0
    %1308 = vmatprep.subr.mxu0 0.0
    %1309 = vmatpush1.msra.mxu0 0.0
    %1310 = vmatprep.subr.mxu0 0.0
    %1311 = vmatpush1.msra.mxu0 0.0
    %1312 = vmatprep.subr.mxu0 0.0
    %1313 = vmatpush1.msra.mxu0 0.0
    %1314 = vmatprep.subr.mxu0 0.0
    %1315 = vmatpush1.msra.mxu0 0.0
    %1316 = vmatprep.subr.mxu0 0.0
    %1317 = vmatpush1.msra.mxu0 0.0
    %1318 = vmatprep.subr.mxu0 0.0
    %1319 = vmatpush1.msra.mxu0 0.0
    %1320 = vmatprep.subr.mxu0 0.0
    %1321 = vmatpush1.msra.mxu0 0.0
    %1322 = vmatprep.subr.mxu0 0.0
    %1323 = vmatpush1.msra.mxu0 0.0
    %1324 = vmatprep.subr.mxu0 0.0
    %1325 = vmatpush1.msra.mxu0 0.0
    %1326 = vmatprep.subr.mxu0 0.0
    %1327 = vmatpush1.msra.mxu0 0.0
    %1328 = vmatprep.subr.mxu0 0.0
    %1329 = vmatpush1.msra.mxu0 0.0
    %1330 = vmatprep.subr.mxu0 0.0
    %1331 = vmatpush1.msra.mxu0 0.0
    %1332 = vmatprep.mubr.f32.mxu0 0.0
    %1333 = vmatmul.mubr.f32.gmra.mrb[0].mxu0 %v1266
    %v1334 = vpop.f32.mrb[0].mxu0
    %v1335 = vadd.f32 0.0, %v1334
    %v1336 = vpop.f32.mrb[0].mxu0
    %1337 = vdwg.mxu0
    %v1338 = vld [vmem:[#allocation2] sm:$0xff]
    %v1339 = vld [vmem:[#allocation2 + $0x8] sm:$0xff]
    %v1340 = vld [vmem:[#allocation2 + $0x10] sm:$0xff]
    %v1341 = vld [vmem:[#allocation2 + $0x18] sm:$0xff]
    %s1342 = scalar_lea.vmem %s5, 2
    %v1343 = vld [vmem:[%s1342] sm:$0x3]
    %v1345 = vsel %vm774, %v1343, 0
    %1347 = vmatprep.subr.mxu0 0.0
    %1348 = vmatpush1.msra.mxu0 %v1256
    %1349 = vmatprep.subr.mxu0 0.0
    %1350 = vmatpush1.msra.mxu0 %v1261
    %1351 = vmatprep.subr.mxu0 0.0
    %1352 = vmatpush1.msra.mxu0 0.0
    %1353 = vmatprep.subr.mxu0 0.0
    %1354 = vmatpush1.msra.mxu0 0.0
    %1355 = vmatprep.subr.mxu0 0.0
    %1356 = vmatpush1.msra.mxu0 0.0
    %1357 = vmatprep.subr.mxu0 0.0
    %1358 = vmatpush1.msra.mxu0 0.0
    %1359 = vmatprep.subr.mxu0 0.0
    %1360 = vmatpush1.msra.mxu0 0.0
    %1361 = vmatprep.subr.mxu0 0.0
    %1362 = vmatpush1.msra.mxu0 0.0
    %1363 = vmatprep.subr.mxu0 0.0
    %1364 = vmatpush1.msra.mxu0 0.0
    %1365 = vmatprep.subr.mxu0 0.0
    %1366 = vmatpush1.msra.mxu0 0.0
    %1367 = vmatprep.subr.mxu0 0.0
    %1368 = vmatpush1.msra.mxu0 0.0
    %1369 = vmatprep.subr.mxu0 0.0
    %1370 = vmatpush1.msra.mxu0 0.0
    %1371 = vmatprep.subr.mxu0 0.0
    %1372 = vmatpush1.msra.mxu0 0.0
    %1373 = vmatprep.subr.mxu0 0.0
    %1374 = vmatpush1.msra.mxu0 0.0
    %1375 = vmatprep.subr.mxu0 0.0
    %1376 = vmatpush1.msra.mxu0 0.0
    %1377 = vmatprep.subr.mxu0 0.0
    %1378 = vmatpush1.msra.mxu0 0.0
    %1379 = vmatprep.subr.mxu0 0.0
    %1380 = vmatpush1.msra.mxu0 0.0
    %1381 = vmatprep.subr.mxu0 0.0
    %1382 = vmatpush1.msra.mxu0 0.0
    %1383 = vmatprep.subr.mxu0 0.0
    %1384 = vmatpush1.msra.mxu0 0.0
    %1385 = vmatprep.subr.mxu0 0.0
    %1386 = vmatpush1.msra.mxu0 0.0
    %1387 = vmatprep.subr.mxu0 0.0
    %1388 = vmatpush1.msra.mxu0 0.0
    %1389 = vmatprep.subr.mxu0 0.0
    %1390 = vmatpush1.msra.mxu0 0.0
    %1391 = vmatprep.subr.mxu0 0.0
    %1392 = vmatpush1.msra.mxu0 0.0
    %1393 = vmatprep.subr.mxu0 0.0
    %1394 = vmatpush1.msra.mxu0 0.0
    %1395 = vmatprep.subr.mxu0 0.0
    %1396 = vmatpush1.msra.mxu0 0.0
    %1397 = vmatprep.subr.mxu0 0.0
    %1398 = vmatpush1.msra.mxu0 0.0
    %1399 = vmatprep.subr.mxu0 0.0
    %1400 = vmatpush1.msra.mxu0 0.0
    %1401 = vmatprep.subr.mxu0 0.0
    %1402 = vmatpush1.msra.mxu0 0.0
    %1403 = vmatprep.subr.mxu0 0.0
    %1404 = vmatpush1.msra.mxu0 0.0
    %1405 = vmatprep.subr.mxu0 0.0
    %1406 = vmatpush1.msra.mxu0 0.0
    %1407 = vmatprep.subr.mxu0 0.0
    %1408 = vmatpush1.msra.mxu0 0.0
    %1409 = vmatprep.subr.mxu0 0.0
    %1410 = vmatpush1.msra.mxu0 0.0
    %1411 = vmatprep.mubr.f32.mxu0 0.0
    %1412 = vmatmul.mubr.f32.gmra.mrb[0].mxu0 %v1345
    %v1413 = vpop.f32.mrb[0].mxu0
    %v1414 = vadd.f32 0.0, %v1413
    %v1415 = vpop.f32.mrb[0].mxu0
    %1416 = vdwg.mxu0
    %s1417 = scalar_lea.vmem [#allocation2], 32
    %v1418 = vld [vmem:[%s1417] sm:$0xff]
    %v1419 = vld [vmem:[%s1417 + $0x8] sm:$0xff]
    %v1420 = vld [vmem:[%s1417 + $0x10] sm:$0xff]
    %v1421 = vld [vmem:[%s1417 + $0x18] sm:$0xff]
    %v1423 = vsel %vm81, %v1414, 0
    %1425 = vmatprep.subr.mxu0 0.0
    %1426 = vmatpush1.msra.mxu0 %v1418
    %1427 = vmatprep.subr.mxu0 0.0
    %1428 = vmatpush1.msra.mxu0 %v1419
    %1429 = vmatprep.subr.mxu0 0.0
    %1430 = vmatpush1.msra.mxu0 %v1420
    %1431 = vmatprep.subr.mxu0 0.0
    %1432 = vmatpush1.msra.mxu0 %v1421
    %1433 = vmatprep.subr.mxu0 0.0
    %1434 = vmatpush1.msra.mxu0 0.0
    %1435 = vmatprep.subr.mxu0 0.0
    %1436 = vmatpush1.msra.mxu0 0.0
    %1437 = vmatprep.subr.mxu0 0.0
    %1438 = vmatpush1.msra.mxu0 0.0
    %1439 = vmatprep.subr.mxu0 0.0
    %1440 = vmatpush1.msra.mxu0 0.0
    %1441 = vmatprep.subr.mxu0 0.0
    %1442 = vmatpush1.msra.mxu0 0.0
    %1443 = vmatprep.subr.mxu0 0.0
    %1444 = vmatpush1.msra.mxu0 0.0
    %1445 = vmatprep.subr.mxu0 0.0
    %1446 = vmatpush1.msra.mxu0 0.0
    %1447 = vmatprep.subr.mxu0 0.0
    %1448 = vmatpush1.msra.mxu0 0.0
    %1449 = vmatprep.subr.mxu0 0.0
    %1450 = vmatpush1.msra.mxu0 0.0
    %1451 = vmatprep.subr.mxu0 0.0
    %1452 = vmatpush1.msra.mxu0 0.0
    %1453 = vmatprep.subr.mxu0 0.0
    %1454 = vmatpush1.msra.mxu0 0.0
    %1455 = vmatprep.subr.mxu0 0.0
    %1456 = vmatpush1.msra.mxu0 0.0
    %1457 = vmatprep.subr.mxu0 0.0
    %1458 = vmatpush1.msra.mxu0 0.0
    %1459 = vmatprep.subr.mxu0 0.0
    %1460 = vmatpush1.msra.mxu0 0.0
    %1461 = vmatprep.subr.mxu0 0.0
    %1462 = vmatpush1.msra.mxu0 0.0
    %1463 = vmatprep.subr.mxu0 0.0
    %1464 = vmatpush1.msra.mxu0 0.0
    %1465 = vmatprep.subr.mxu0 0.0
    %1466 = vmatpush1.msra.mxu0 0.0
    %1467 = vmatprep.subr.mxu0 0.0
    %1468 = vmatpush1.msra.mxu0 0.0
    %1469 = vmatprep.subr.mxu0 0.0
    %1470 = vmatpush1.msra.mxu0 0.0
    %1471 = vmatprep.subr.mxu0 0.0
    %1472 = vmatpush1.msra.mxu0 0.0
    %1473 = vmatprep.subr.mxu0 0.0
    %1474 = vmatpush1.msra.mxu0 0.0
    %1475 = vmatprep.subr.mxu0 0.0
    %1476 = vmatpush1.msra.mxu0 0.0
    %1477 = vmatprep.subr.mxu0 0.0
    %1478 = vmatpush1.msra.mxu0 0.0
    %1479 = vmatprep.subr.mxu0 0.0
    %1480 = vmatpush1.msra.mxu0 0.0
    %1481 = vmatprep.subr.mxu0 0.0
    %1482 = vmatpush1.msra.mxu0 0.0
    %1483 = vmatprep.subr.mxu0 0.0
    %1484 = vmatpush1.msra.mxu0 0.0
    %1485 = vmatprep.subr.mxu0 0.0
    %1486 = vmatpush1.msra.mxu0 0.0
    %1487 = vmatprep.subr.mxu0 0.0
    %1488 = vmatpush1.msra.mxu0 0.0
    %1489 = vmatprep.mubr.f32.mxu0 0.0
    %1490 = vmatmul.mubr.f32.gmra.mrb[0].mxu0 %v1423
    %v1491 = vpop.f32.mrb[0].mxu0
    %v1492 = vadd.f32 0.0, %v1491
    %v1493 = vpop.f32.mrb[0].mxu0
    %1494 = vdwg.mxu0
    %s1495 = scalar_lea.vmem %s5, 4
    %v1496 = vld [vmem:[%s1495] sm:$0x3]
    %v1498 = vsel %vm774, %v1496, 0
    %1500 = vmatprep.subr.mxu0 0.0
    %1501 = vmatpush1.msra.mxu0 %v1256
    %1502 = vmatprep.subr.mxu0 0.0
    %1503 = vmatpush1.msra.mxu0 %v1261
    %1504 = vmatprep.subr.mxu0 0.0
    %1505 = vmatpush1.msra.mxu0 0.0
    %1506 = vmatprep.subr.mxu0 0.0
    %1507 = vmatpush1.msra.mxu0 0.0
    %1508 = vmatprep.subr.mxu0 0.0
    %1509 = vmatpush1.msra.mxu0 0.0
    %1510 = vmatprep.subr.mxu0 0.0
    %1511 = vmatpush1.msra.mxu0 0.0
    %1512 = vmatprep.subr.mxu0 0.0
    %1513 = vmatpush1.msra.mxu0 0.0
    %1514 = vmatprep.subr.mxu0 0.0
    %1515 = vmatpush1.msra.mxu0 0.0
    %1516 = vmatprep.subr.mxu0 0.0
    %1517 = vmatpush1.msra.mxu0 0.0
    %1518 = vmatprep.subr.mxu0 0.0
    %1519 = vmatpush1.msra.mxu0 0.0
    %1520 = vmatprep.subr.mxu0 0.0
    %1521 = vmatpush1.msra.mxu0 0.0
    %1522 = vmatprep.subr.mxu0 0.0
    %1523 = vmatpush1.msra.mxu0 0.0
    %1524 = vmatprep.subr.mxu0 0.0
    %1525 = vmatpush1.msra.mxu0 0.0
    %1526 = vmatprep.subr.mxu0 0.0
    %1527 = vmatpush1.msra.mxu0 0.0
    %1528 = vmatprep.subr.mxu0 0.0
    %1529 = vmatpush1.msra.mxu0 0.0
    %1530 = vmatprep.subr.mxu0 0.0
    %1531 = vmatpush1.msra.mxu0 0.0
    %1532 = vmatprep.subr.mxu0 0.0
    %1533 = vmatpush1.msra.mxu0 0.0
    %1534 = vmatprep.subr.mxu0 0.0
    %1535 = vmatpush1.msra.mxu0 0.0
    %1536 = vmatprep.subr.mxu0 0.0
    %1537 = vmatpush1.msra.mxu0 0.0
    %1538 = vmatprep.subr.mxu0 0.0
    %1539 = vmatpush1.msra.mxu0 0.0
    %1540 = vmatprep.subr.mxu0 0.0
    %1541 = vmatpush1.msra.mxu0 0.0
    %1542 = vmatprep.subr.mxu0 0.0
    %1543 = vmatpush1.msra.mxu0 0.0
    %1544 = vmatprep.subr.mxu0 0.0
    %1545 = vmatpush1.msra.mxu0 0.0
    %1546 = vmatprep.subr.mxu0 0.0
    %1547 = vmatpush1.msra.mxu0 0.0
    %1548 = vmatprep.subr.mxu0 0.0
    %1549 = vmatpush1.msra.mxu0 0.0
    %1550 = vmatprep.subr.mxu0 0.0
    %1551 = vmatpush1.msra.mxu0 0.0
    %1552 = vmatprep.subr.mxu0 0.0
    %1553 = vmatpush1.msra.mxu0 0.0
    %1554 = vmatprep.subr.mxu0 0.0
    %1555 = vmatpush1.msra.mxu0 0.0
    %1556 = vmatprep.subr.mxu0 0.0
    %1557 = vmatpush1.msra.mxu0 0.0
    %1558 = vmatprep.subr.mxu0 0.0
    %1559 = vmatpush1.msra.mxu0 0.0
    %1560 = vmatprep.subr.mxu0 0.0
    %1561 = vmatpush1.msra.mxu0 0.0
    %1562 = vmatprep.subr.mxu0 0.0
    %1563 = vmatpush1.msra.mxu0 0.0
    %1564 = vmatprep.mubr.f32.mxu0 0.0
    %1565 = vmatmul.mubr.f32.gmra.mrb[0].mxu0 %v1498
    %v1566 = vpop.f32.mrb[0].mxu0
    %v1567 = vadd.f32 0.0, %v1566
    %v1568 = vpop.f32.mrb[0].mxu0
    %1569 = vdwg.mxu0
    %s1570 = scalar_lea.vmem [#allocation2], 64
    %v1571 = vld [vmem:[%s1570] sm:$0xff]
    %v1572 = vld [vmem:[%s1570 + $0x8] sm:$0xff]
    %v1573 = vld [vmem:[%s1570 + $0x10] sm:$0xff]
    %v1574 = vld [vmem:[%s1570 + $0x18] sm:$0xff]
    %s1575 = scalar_lea.vmem %s5, 6
    %v1576 = vld [vmem:[%s1575] sm:$0x3]
    %v1578 = vsel %vm774, %v1576, 0
    %1580 = vmatprep.subr.mxu0 0.0
    %1581 = vmatpush1.msra.mxu0 %v1256
    %1582 = vmatprep.subr.mxu0 0.0
    %1583 = vmatpush1.msra.mxu0 %v1261
    %1584 = vmatprep.subr.mxu0 0.0
    %1585 = vmatpush1.msra.mxu0 0.0
    %1586 = vmatprep.subr.mxu0 0.0
    %1587 = vmatpush1.msra.mxu0 0.0
    %1588 = vmatprep.subr.mxu0 0.0
    %1589 = vmatpush1.msra.mxu0 0.0
    %1590 = vmatprep.subr.mxu0 0.0
    %1591 = vmatpush1.msra.mxu0 0.0
    %1592 = vmatprep.subr.mxu0 0.0
    %1593 = vmatpush1.msra.mxu0 0.0
    %1594 = vmatprep.subr.mxu0 0.0
    %1595 = vmatpush1.msra.mxu0 0.0
    %1596 = vmatprep.subr.mxu0 0.0
    %1597 = vmatpush1.msra.mxu0 0.0
    %1598 = vmatprep.subr.mxu0 0.0
    %1599 = vmatpush1.msra.mxu0 0.0
    %1600 = vmatprep.subr.mxu0 0.0
    %1601 = vmatpush1.msra.mxu0 0.0
    %1602 = vmatprep.subr.mxu0 0.0
    %1603 = vmatpush1.msra.mxu0 0.0
    %1604 = vmatprep.subr.mxu0 0.0
    %1605 = vmatpush1.msra.mxu0 0.0
    %1606 = vmatprep.subr.mxu0 0.0
    %1607 = vmatpush1.msra.mxu0 0.0
    %1608 = vmatprep.subr.mxu0 0.0
    %1609 = vmatpush1.msra.mxu0 0.0
    %1610 = vmatprep.subr.mxu0 0.0
    %1611 = vmatpush1.msra.mxu0 0.0
    %1612 = vmatprep.subr.mxu0 0.0
    %1613 = vmatpush1.msra.mxu0 0.0
    %1614 = vmatprep.subr.mxu0 0.0
    %1615 = vmatpush1.msra.mxu0 0.0
    %1616 = vmatprep.subr.mxu0 0.0
    %1617 = vmatpush1.msra.mxu0 0.0
    %1618 = vmatprep.subr.mxu0 0.0
    %1619 = vmatpush1.msra.mxu0 0.0
    %1620 = vmatprep.subr.mxu0 0.0
    %1621 = vmatpush1.msra.mxu0 0.0
    %1622 = vmatprep.subr.mxu0 0.0
    %1623 = vmatpush1.msra.mxu0 0.0
    %1624 = vmatprep.subr.mxu0 0.0
    %1625 = vmatpush1.msra.mxu0 0.0
    %1626 = vmatprep.subr.mxu0 0.0
    %1627 = vmatpush1.msra.mxu0 0.0
    %1628 = vmatprep.subr.mxu0 0.0
    %1629 = vmatpush1.msra.mxu0 0.0
    %1630 = vmatprep.subr.mxu0 0.0
    %1631 = vmatpush1.msra.mxu0 0.0
    %1632 = vmatprep.subr.mxu0 0.0
    %1633 = vmatpush1.msra.mxu0 0.0
    %1634 = vmatprep.subr.mxu0 0.0
    %1635 = vmatpush1.msra.mxu0 0.0
    %1636 = vmatprep.subr.mxu0 0.0
    %1637 = vmatpush1.msra.mxu0 0.0
    %1638 = vmatprep.subr.mxu0 0.0
    %1639 = vmatpush1.msra.mxu0 0.0
    %1640 = vmatprep.subr.mxu0 0.0
    %1641 = vmatpush1.msra.mxu0 0.0
    %1642 = vmatprep.subr.mxu0 0.0
    %1643 = vmatpush1.msra.mxu0 0.0
    %1644 = vmatprep.mubr.f32.mxu0 0.0
    %1645 = vmatmul.mubr.f32.gmra.mrb[0].mxu0 %v1578
    %v1646 = vpop.f32.mrb[0].mxu0
    %v1647 = vadd.f32 0.0, %v1646
    %v1648 = vpop.f32.mrb[0].mxu0
    %1649 = vdwg.mxu0
    %s1650 = scalar_lea.vmem [#allocation2], 96
    %v1651 = vld [vmem:[%s1650] sm:$0xff]
    %v1652 = vld [vmem:[%s1650 + $0x8] sm:$0xff]
    %v1653 = vld [vmem:[%s1650 + $0x10] sm:$0xff]
    %v1654 = vld [vmem:[%s1650 + $0x18] sm:$0xff]
    %v1656 = vsel %vm81, %v1647, 0
    %1658 = vmatprep.subr.mxu0 0.0
    %1659 = vmatpush1.msra.mxu0 %v1651
    %1660 = vmatprep.subr.mxu0 0.0
    %1661 = vmatpush1.msra.mxu0 %v1652
    %1662 = vmatprep.subr.mxu0 0.0
    %1663 = vmatpush1.msra.mxu0 %v1653
    %1664 = vmatprep.subr.mxu0 0.0
    %1665 = vmatpush1.msra.mxu0 %v1654
    %1666 = vmatprep.subr.mxu0 0.0
    %1667 = vmatpush1.msra.mxu0 0.0
    %1668 = vmatprep.subr.mxu0 0.0
    %1669 = vmatpush1.msra.mxu0 0.0
    %1670 = vmatprep.subr.mxu0 0.0
    %1671 = vmatpush1.msra.mxu0 0.0
    %1672 = vmatprep.subr.mxu0 0.0
    %1673 = vmatpush1.msra.mxu0 0.0
    %1674 = vmatprep.subr.mxu0 0.0
    %1675 = vmatpush1.msra.mxu0 0.0
    %1676 = vmatprep.subr.mxu0 0.0
    %1677 = vmatpush1.msra.mxu0 0.0
    %1678 = vmatprep.subr.mxu0 0.0
    %1679 = vmatpush1.msra.mxu0 0.0
    %1680 = vmatprep.subr.mxu0 0.0
    %1681 = vmatpush1.msra.mxu0 0.0
    %1682 = vmatprep.subr.mxu0 0.0
    %1683 = vmatpush1.msra.mxu0 0.0
    %1684 = vmatprep.subr.mxu0 0.0
    %1685 = vmatpush1.msra.mxu0 0.0
    %1686 = vmatprep.subr.mxu0 0.0
    %1687 = vmatpush1.msra.mxu0 0.0
    %1688 = vmatprep.subr.mxu0 0.0
    %1689 = vmatpush1.msra.mxu0 0.0
    %1690 = vmatprep.subr.mxu0 0.0
    %1691 = vmatpush1.msra.mxu0 0.0
    %1692 = vmatprep.subr.mxu0 0.0
    %1693 = vmatpush1.msra.mxu0 0.0
    %1694 = vmatprep.subr.mxu0 0.0
    %1695 = vmatpush1.msra.mxu0 0.0
    %1696 = vmatprep.subr.mxu0 0.0
    %1697 = vmatpush1.msra.mxu0 0.0
    %1698 = vmatprep.subr.mxu0 0.0
    %1699 = vmatpush1.msra.mxu0 0.0
    %1700 = vmatprep.subr.mxu0 0.0
    %1701 = vmatpush1.msra.mxu0 0.0
    %1702 = vmatprep.subr.mxu0 0.0
    %1703 = vmatpush1.msra.mxu0 0.0
    %1704 = vmatprep.subr.mxu0 0.0
    %1705 = vmatpush1.msra.mxu0 0.0
    %1706 = vmatprep.subr.mxu0 0.0
    %1707 = vmatpush1.msra.mxu0 0.0
    %1708 = vmatprep.subr.mxu0 0.0
    %1709 = vmatpush1.msra.mxu0 0.0
    %1710 = vmatprep.subr.mxu0 0.0
    %1711 = vmatpush1.msra.mxu0 0.0
    %1712 = vmatprep.subr.mxu0 0.0
    %1713 = vmatpush1.msra.mxu0 0.0
    %1714 = vmatprep.subr.mxu0 0.0
    %1715 = vmatpush1.msra.mxu0 0.0
    %1716 = vmatprep.subr.mxu0 0.0
    %1717 = vmatpush1.msra.mxu0 0.0
    %1718 = vmatprep.subr.mxu0 0.0
    %1719 = vmatpush1.msra.mxu0 0.0
    %1720 = vmatprep.subr.mxu0 0.0
    %1721 = vmatpush1.msra.mxu0 0.0
    %1722 = vmatprep.mubr.f32.mxu0 0.0
    %1723 = vmatmul.mubr.f32.gmra.mrb[0].mxu0 %v1656
    %v1724 = vpop.f32.mrb[0].mxu0
    %v1725 = vadd.f32 0.0, %v1724
    %v1726 = vpop.f32.mrb[0].mxu0
    %1727 = vdwg.mxu0
    %v1729 = vsel %vm81, %v1335, 0
    %1731 = vmatprep.subr.mxu0 0.0
    %1732 = vmatpush1.msra.mxu0 %v1338
    %1733 = vmatprep.subr.mxu0 0.0
    %1734 = vmatpush1.msra.mxu0 %v1339
    %1735 = vmatprep.subr.mxu0 0.0
    %1736 = vmatpush1.msra.mxu0 %v1340
    %1737 = vmatprep.subr.mxu0 0.0
    %1738 = vmatpush1.msra.mxu0 %v1341
    %1739 = vmatprep.subr.mxu0 0.0
    %1740 = vmatpush1.msra.mxu0 0.0
    %1741 = vmatprep.subr.mxu0 0.0
    %1742 = vmatpush1.msra.mxu0 0.0
    %1743 = vmatprep.subr.mxu0 0.0
    %1744 = vmatpush1.msra.mxu0 0.0
    %1745 = vmatprep.subr.mxu0 0.0
    %1746 = vmatpush1.msra.mxu0 0.0
    %1747 = vmatprep.subr.mxu0 0.0
    %1748 = vmatpush1.msra.mxu0 0.0
    %1749 = vmatprep.subr.mxu0 0.0
    %1750 = vmatpush1.msra.mxu0 0.0
    %1751 = vmatprep.subr.mxu0 0.0
    %1752 = vmatpush1.msra.mxu0 0.0
    %1753 = vmatprep.subr.mxu0 0.0
    %1754 = vmatpush1.msra.mxu0 0.0
    %1755 = vmatprep.subr.mxu0 0.0
    %1756 = vmatpush1.msra.mxu0 0.0
    %1757 = vmatprep.subr.mxu0 0.0
    %1758 = vmatpush1.msra.mxu0 0.0
    %1759 = vmatprep.subr.mxu0 0.0
    %1760 = vmatpush1.msra.mxu0 0.0
    %1761 = vmatprep.subr.mxu0 0.0
    %1762 = vmatpush1.msra.mxu0 0.0
    %1763 = vmatprep.subr.mxu0 0.0
    %1764 = vmatpush1.msra.mxu0 0.0
    %1765 = vmatprep.subr.mxu0 0.0
    %1766 = vmatpush1.msra.mxu0 0.0
    %1767 = vmatprep.subr.mxu0 0.0
    %1768 = vmatpush1.msra.mxu0 0.0
    %1769 = vmatprep.subr.mxu0 0.0
    %1770 = vmatpush1.msra.mxu0 0.0
    %1771 = vmatprep.subr.mxu0 0.0
    %1772 = vmatpush1.msra.mxu0 0.0
    %1773 = vmatprep.subr.mxu0 0.0
    %1774 = vmatpush1.msra.mxu0 0.0
    %1775 = vmatprep.subr.mxu0 0.0
    %1776 = vmatpush1.msra.mxu0 0.0
    %1777 = vmatprep.subr.mxu0 0.0
    %1778 = vmatpush1.msra.mxu0 0.0
    %1779 = vmatprep.subr.mxu0 0.0
    %1780 = vmatpush1.msra.mxu0 0.0
    %1781 = vmatprep.subr.mxu0 0.0
    %1782 = vmatpush1.msra.mxu0 0.0
    %1783 = vmatprep.subr.mxu0 0.0
    %1784 = vmatpush1.msra.mxu0 0.0
    %1785 = vmatprep.subr.mxu0 0.0
    %1786 = vmatpush1.msra.mxu0 0.0
    %1787 = vmatprep.subr.mxu0 0.0
    %1788 = vmatpush1.msra.mxu0 0.0
    %1789 = vmatprep.subr.mxu0 0.0
    %1790 = vmatpush1.msra.mxu0 0.0
    %1791 = vmatprep.subr.mxu0 0.0
    %1792 = vmatpush1.msra.mxu0 0.0
    %1793 = vmatprep.subr.mxu0 0.0
    %1794 = vmatpush1.msra.mxu0 0.0
    %1795 = vmatprep.mubr.f32.mxu0 0.0
    %1796 = vmatmul.mubr.f32.gmra.mrb[0].mxu0 %v1729
    %v1797 = vpop.f32.mrb[0].mxu0
    %v1798 = vadd.f32 %v1492, %v1797
    %v1799 = vpop.f32.mrb[0].mxu0
    %1800 = vdwg.mxu0
    %v1802 = vsel %vm81, %v1567, 0
    %1804 = vmatprep.subr.mxu0 0.0
    %1805 = vmatpush1.msra.mxu0 %v1571
    %1806 = vmatprep.subr.mxu0 0.0
    %1807 = vmatpush1.msra.mxu0 %v1572
    %1808 = vmatprep.subr.mxu0 0.0
    %1809 = vmatpush1.msra.mxu0 %v1573
    %1810 = vmatprep.subr.mxu0 0.0
    %1811 = vmatpush1.msra.mxu0 %v1574
    %1812 = vmatprep.subr.mxu0 0.0
    %1813 = vmatpush1.msra.mxu0 0.0
    %1814 = vmatprep.subr.mxu0 0.0
    %1815 = vmatpush1.msra.mxu0 0.0
    %1816 = vmatprep.subr.mxu0 0.0
    %1817 = vmatpush1.msra.mxu0 0.0
    %1818 = vmatprep.subr.mxu0 0.0
    %1819 = vmatpush1.msra.mxu0 0.0
    %1820 = vmatprep.subr.mxu0 0.0
    %1821 = vmatpush1.msra.mxu0 0.0
    %1822 = vmatprep.subr.mxu0 0.0
    %1823 = vmatpush1.msra.mxu0 0.0
    %1824 = vmatprep.subr.mxu0 0.0
    %1825 = vmatpush1.msra.mxu0 0.0
    %1826 = vmatprep.subr.mxu0 0.0
    %1827 = vmatpush1.msra.mxu0 0.0
    %1828 = vmatprep.subr.mxu0 0.0
    %1829 = vmatpush1.msra.mxu0 0.0
    %1830 = vmatprep.subr.mxu0 0.0
    %1831 = vmatpush1.msra.mxu0 0.0
    %1832 = vmatprep.subr.mxu0 0.0
    %1833 = vmatpush1.msra.mxu0 0.0
    %1834 = vmatprep.subr.mxu0 0.0
    %1835 = vmatpush1.msra.mxu0 0.0
    %1836 = vmatprep.subr.mxu0 0.0
    %1837 = vmatpush1.msra.mxu0 0.0
    %1838 = vmatprep.subr.mxu0 0.0
    %1839 = vmatpush1.msra.mxu0 0.0
    %1840 = vmatprep.subr.mxu0 0.0
    %1841 = vmatpush1.msra.mxu0 0.0
    %1842 = vmatprep.subr.mxu0 0.0
    %1843 = vmatpush1.msra.mxu0 0.0
    %1844 = vmatprep.subr.mxu0 0.0
    %1845 = vmatpush1.msra.mxu0 0.0
    %1846 = vmatprep.subr.mxu0 0.0
    %1847 = vmatpush1.msra.mxu0 0.0
    %1848 = vmatprep.subr.mxu0 0.0
    %1849 = vmatpush1.msra.mxu0 0.0
    %1850 = vmatprep.subr.mxu0 0.0
    %1851 = vmatpush1.msra.mxu0 0.0
    %1852 = vmatprep.subr.mxu0 0.0
    %1853 = vmatpush1.msra.mxu0 0.0
    %1854 = vmatprep.subr.mxu0 0.0
    %1855 = vmatpush1.msra.mxu0 0.0
    %1856 = vmatprep.subr.mxu0 0.0
    %1857 = vmatpush1.msra.mxu0 0.0
    %1858 = vmatprep.subr.mxu0 0.0
    %1859 = vmatpush1.msra.mxu0 0.0
    %1860 = vmatprep.subr.mxu0 0.0
    %1861 = vmatpush1.msra.mxu0 0.0
    %1862 = vmatprep.subr.mxu0 0.0
    %1863 = vmatpush1.msra.mxu0 0.0
    %1864 = vmatprep.subr.mxu0 0.0
    %1865 = vmatpush1.msra.mxu0 0.0
    %1866 = vmatprep.subr.mxu0 0.0
    %1867 = vmatpush1.msra.mxu0 0.0
    %1868 = vmatprep.mubr.f32.mxu0 0.0
    %1869 = vmatmul.mubr.f32.gmra.mrb[0].mxu0 %v1802
    %v1870 = vpop.f32.mrb[0].mxu0
    %v1871 = vadd.f32 %v1725, %v1870
    %v1872 = vpop.f32.mrb[0].mxu0
    %1873 = vdwg.mxu0
    %v1874 = vadd.f32 %v1798, %v1871
    %v1875 = vld [vmem:[%s7] sm:$0x1]
    %v1877 = vlaneseq
    %v1878 = vshrl.u32 %v1877, 7
    %v1879 = vsub.s32 0, %v1878
    %v1880 = vrot.slane %v1875, %v1879
    %v1882 = vadd.f32 %v1874, %v1880
    %v1883 = vadd.f32 %v1882, %v44
    %1884 = vst [vmem:[#allocation5] sm:$0x3] %v1883
    // Predicated region
    $region38: #{tpu_custom_call.1} parent=1 // pred_check
      _
    $region39: #{tpu_custom_call.1} parent=1 // pred_check_branch
      %1886 = sbr.rel (0) target = $region41
    $region40: #{tpu_custom_call.1} parent=1 // pred_region
      %s1888 = ssub.s32 32, 32
      %1889 = vsyncadd [#allocation4], %s1888
      %s1891 = sshll.u32 [#allocation5], 4
      %s1892 = int_to_ptr.vmem [resolvable:$true] %s1891
      %1894 = dma.vmem_to_hbm [thread:$0]  %s1892, 32, %s8, [#allocation4]
    $region41: #{tpu_custom_call.1} parent=1 // pred_fallthru
      _
    // Predicated region
    $region42: #{tpu_custom_call.1} parent=1 // pred_check
      _
    $region43: #{tpu_custom_call.1} parent=1 // pred_check_branch
      %1896 = sbr.rel (0) target = $region45
    $region44: #{tpu_custom_call.1} parent=1 // pred_region
      %1897 = dma.done [#allocation4], 32
    $region45: #{tpu_custom_call.1} parent=1 // pred_fallthru
      _
    %1898 = vsyncpa [#allocation3], 1
    %1899 = vsyncpa [#allocation4], 1

</llo_original>
